<compile_context>
chip_gen: v6e
topology: v6e:2x2x1
jax: 0.10.0
libtpu: 0.0.40
codegen_flags: <defaults>
</compile_context>

<pallas_src>
import functools

import jax
import jax.numpy as jnp
from jax import lax
from jax.experimental import pallas as pl
from jax.experimental.pallas import tpu as pltpu


def _round_up(n, m):
    return ((n + m - 1) // m) * m


# --------------------------------------------------------------------------------------
# Kernel 1: GroupNorm + fused q|k|v projection (one batch element per grid step).
# --------------------------------------------------------------------------------------
def _norm_qkv_kernel(x_ref, gmix_ref, gamma_ref, beta_ref, wqkv_ref, bqkv_ref,
                     qkv_ref, *, inv_count, eps, compute_dtype):
    xb = x_ref[0]                                     # (HW, Cp) f32, channel-padded
    gmix = gmix_ref[...]                              # (Cp, Cp) same-group indicator (f32)

    # GroupNorm stats: reduce over the spatial axis first (XLU sublane reduce),
    # then mix the (1, Cp) per-channel sums across each group with a tiny matmul.
    col_sum = jnp.sum(xb, axis=0, keepdims=True)                                  # (1, Cp)
    mean = jnp.dot(col_sum, gmix, preferred_element_type=jnp.float32) * inv_count
    xc = xb - mean
    sq_sum = jnp.sum(xc * xc, axis=0, keepdims=True)                              # (1, Cp)
    var = jnp.dot(sq_sum, gmix, preferred_element_type=jnp.float32) * inv_count
    hn = xc * lax.rsqrt(var + eps) * gamma_ref[...] + beta_ref[...]               # f32

    # Fused q|k|v projection: single (HW,Cp)x(Cp,3Cp) MXU matmul, bf16 operands,
    # f32 accumulation.  The C^-0.5 attention scale is folded into wq/bq already.
    qkv = (jnp.dot(hn.astype(compute_dtype), wqkv_ref[...],
                   preferred_element_type=jnp.float32)
           + bqkv_ref[...])
    qkv_ref[0] = qkv.astype(qkv_ref.dtype)


# --------------------------------------------------------------------------------------
# Kernel 2: flash-style attention over kv tiles + proj_out + residual.
# grid = (B, HW // tq, HW // tk); kv axis is innermost ("arbitrary").
# --------------------------------------------------------------------------------------
def _flash_attn_proj_kernel(q_ref, k_ref, v_ref, x_ref, wp_ref, bp_ref, o_ref,
                            m_sc, l_sc, acc_sc, *, compute_dtype):
    ki = pl.program_id(2)

    @pl.when(ki == 0)
    def _init():
        m_sc[...] = jnp.full_like(m_sc, -jnp.inf)
        l_sc[...] = jnp.zeros_like(l_sc)
        acc_sc[...] = jnp.zeros_like(acc_sc)

    # Logits for this (q-tile, kv-tile).  Scale already folded into q.
    s = lax.dot_general(q_ref[0], k_ref[0],
                        dimension_numbers=(((1,), (1,)), ((), ())),
                        preferred_element_type=jnp.float32)          # (tq, tk) f32

    m_prev = m_sc[...]
    m_new = jnp.maximum(m_prev, jnp.max(s, axis=-1, keepdims=True))  # (tq, 1)
    alpha = jnp.exp(m_prev - m_new)
    p = jnp.exp(s - m_new)                                           # unnormalized probs
    l_sc[...] = alpha * l_sc[...] + jnp.sum(p, axis=-1, keepdims=True)
    acc_sc[...] = alpha * acc_sc[...] + jnp.dot(
        p.astype(compute_dtype), v_ref[0], preferred_element_type=jnp.float32)
    m_sc[...] = m_new

    @pl.when(ki == pl.num_programs(2) - 1)
    def _finalize():
        # Deferred softmax normalization on the (tq, Cp) accumulator (EUP reciprocal).
        attn = acc_sc[...] * pl.reciprocal(l_sc[...], approx=True)
        out = (jnp.dot(attn.astype(compute_dtype), wp_ref[...],
                       preferred_element_type=jnp.float32)
               + bp_ref[...] + x_ref[0])                              # residual read late
        o_ref[0] = out.astype(o_ref.dtype)


# --------------------------------------------------------------------------------------
# Wrapper
# --------------------------------------------------------------------------------------
def attn_block_forward(x, params, *, num_groups=32, eps=1e-6,
                       compute_dtype=jnp.bfloat16, tq=None, tk=None,
                       interpret=False):
    """Fused AttnBlock forward.

    Args:
      x:      (B, C, H, W) float32, C divisible by num_groups.
      params: (gamma, beta, wq, bq, wk, bk, wv, bv, wp, bp); gamma/beta/b* are (C,)
              and w* are (C_in, C_out) = transpose of torch Conv2d's (Cout, Cin, 1, 1).
      compute_dtype: MXU operand dtype (bf16 default: native MXU rate on v5e/v6e/v7x;
              accumulation and GroupNorm/softmax math stay f32).
      tq, tk: query / key tile sizes for the flash attention kernel (must divide H*W).
    Returns:
      (B, C, H, W) float32.
    """
    gamma, beta, wq, bq, wk, bk, wv, bv, wp, bp = params
    B, C, H, W = x.shape
    HW = H * W
    assert C % num_groups == 0, "GroupNorm requires C % num_groups == 0"
    Cp = max(_round_up(C, 128), 128)          # lane-dense channel padding

    if tq is None:
        tq = min(HW, 256)
    if tk is None:
        tk = min(HW, 512)
    assert HW % tq == 0 and HW % tk == 0, "tile sizes must divide H*W"
    assert tq % 8 == 0 and tk % 8 == 0, "tile sizes must be multiples of 8"

    f32 = jnp.float32
    # NCHW -> (B, HW, C) with channels on the lane axis; zero-pad channels to Cp.
    x_seq = jnp.transpose(x.reshape(B, C, HW), (0, 2, 1)).astype(f32)
    x_seq = jnp.pad(x_seq, ((0, 0), (0, 0), (0, Cp - C)))

    def pad_vec(v):
        return jnp.pad(v.reshape(1, -1).astype(f32), ((0, 0), (0, Cp - C)))

    def pad_mat(w):
        return jnp.pad(w.astype(f32), ((0, Cp - C), (0, Cp - C)))

    scale = float(C) ** -0.5
    gamma_p, beta_p = pad_vec(gamma), pad_vec(beta)
    # Fused q|k|v weights; attention scale folded into the q columns.
    wqkv = jnp.concatenate(
        [pad_mat(wq * scale), pad_mat(wk), pad_mat(wv)], axis=1).astype(compute_dtype)
    bqkv = jnp.concatenate([pad_vec(bq * scale), pad_vec(bk), pad_vec(bv)], axis=1)
    wp_p = pad_mat(wp).astype(compute_dtype)
    bp_p = pad_vec(bp)

    # Same-group indicator over padded channels (padded channels belong to no group).
    cg = C // num_groups
    ch = jnp.arange(Cp)
    valid = ch < C
    gid = jnp.where(valid, ch // cg, -1)
    gmix = ((gid[:, None] == gid[None, :])
            & valid[:, None] & valid[None, :]).astype(f32)

    def resident(shape):
        # Constant index_map -> block is VMEM-resident across grid steps.
        return pl.BlockSpec(shape, lambda *idx: tuple(0 for _ in shape))

    # ---- Kernel 1: GroupNorm + fused QKV projection -------------------------------
    norm_qkv = functools.partial(_norm_qkv_kernel, inv_count=1.0 / float(cg * HW),
                                 eps=eps, compute_dtype=compute_dtype)
    qkv = pl.pallas_call(
        norm_qkv,
        out_shape=jax.ShapeDtypeStruct((B, HW, 3 * Cp), compute_dtype),
        grid_spec=pltpu.PrefetchScalarGridSpec(
            num_scalar_prefetch=0,
            grid=(B,),
            in_specs=[
                pl.BlockSpec((1, HW, Cp), lambda b: (b, 0, 0)),   # x (per-batch tile)
                resident((Cp, Cp)),                               # gmix
                resident((1, Cp)),                                # gamma
                resident((1, Cp)),                                # beta
                resident((Cp, 3 * Cp)),                           # wqkv (bf16)
                resident((1, 3 * Cp)),                            # bqkv
            ],
            out_specs=pl.BlockSpec((1, HW, 3 * Cp), lambda b: (b, 0, 0)),
        ),
        compiler_params=pltpu.CompilerParams(dimension_semantics=("parallel",)),
        interpret=interpret,
    )(x_seq, gmix, gamma_p, beta_p, wqkv, bqkv)

    # ---- Kernel 2: flash attention + proj_out + residual ---------------------------
    nq, nk = HW // tq, HW // tk
    flash = functools.partial(_flash_attn_proj_kernel, compute_dtype=compute_dtype)
    out = pl.pallas_call(
        flash,
        out_shape=jax.ShapeDtypeStruct((B, HW, Cp), jnp.float32),
        grid_spec=pltpu.PrefetchScalarGridSpec(
            num_scalar_prefetch=0,
            grid=(B, nq, nk),
            in_specs=[
                # q / k / v slabs of the packed qkv array (last-dim block index 0/1/2).
                pl.BlockSpec((1, tq, Cp), lambda b, qi, ki: (b, qi, 0)),
                pl.BlockSpec((1, tk, Cp), lambda b, qi, ki: (b, ki, 1)),
                pl.BlockSpec((1, tk, Cp), lambda b, qi, ki: (b, ki, 2)),
                pl.BlockSpec((1, tq, Cp), lambda b, qi, ki: (b, qi, 0)),   # residual x
                pl.BlockSpec((Cp, Cp), lambda b, qi, ki: (0, 0)),          # wp (bf16)
                pl.BlockSpec((1, Cp), lambda b, qi, ki: (0, 0)),           # bp
            ],
            out_specs=pl.BlockSpec((1, tq, Cp), lambda b, qi, ki: (b, qi, 0)),
            scratch_shapes=[pltpu.VMEM((tq, 1), jnp.float32),      # running max m
                            pltpu.VMEM((tq, 1), jnp.float32),      # running sum l
                            pltpu.VMEM((tq, Cp), jnp.float32)],    # running PV acc
        ),
        compiler_params=pltpu.CompilerParams(
            dimension_semantics=("parallel", "parallel", "arbitrary")),
        interpret=interpret,
    )(qkv, qkv, qkv, x_seq, wp_p, bp_p)

    # Drop channel padding, back to NCHW.
    out = out[:, :, :C]
    return jnp.transpose(out, (0, 2, 1)).reshape(B, C, H, W)


# --------------------------------------------------------------------------------------
# Pure-JAX reference mirroring the PyTorch AttnBlock forward.
# --------------------------------------------------------------------------------------
def attn_block_reference(x, params, *, num_groups=32, eps=1e-6):
    gamma, beta, wq, bq, wk, bk, wv, bv, wp, bp = params
    B, C, H, W = x.shape
    cg = C // num_groups

    xr = x.reshape(B, num_groups, cg, H, W)
    mean = xr.mean(axis=(2, 3, 4), keepdims=True)
    var = jnp.mean((xr - mean) ** 2, axis=(2, 3, 4), keepdims=True)
    hn = ((xr - mean) * lax.rsqrt(var + eps)).reshape(B, C, H, W)
    hn = hn * gamma[None, :, None, None] + beta[None, :, None, None]

    def conv1x1(t, w, b):
        # w is (Cin, Cout) = transpose of torch Conv2d weight (Cout, Cin, 1, 1).
        return jnp.einsum('bchw,cd->bdhw', t, w) + b[None, :, None, None]

    q = conv1x1(hn, wq, bq)
    k = conv1x1(hn, wk, bk)
    v = conv1x1(hn, wv, bv)

    q = jnp.transpose(q.reshape(B, C, H * W), (0, 2, 1))          # (B, HW, C)
    k = k.reshape(B, C, H * W)                                    # (B, C, HW)
    w_ = jnp.einsum('bic,bcj->bij', q, k) * (float(C) ** -0.5)    # (B, HW, HW)
    w_ = jax.nn.softmax(w_, axis=2)
    v = v.reshape(B, C, H * W)
    h_ = jnp.einsum('bcj,bij->bci', v, w_).reshape(B, C, H, W)
    h_ = conv1x1(h_, wp, bp)
    return x + h_


if __name__ == "__main__":
    # Small shapes consistent with the module: GroupNorm(32, C) needs C % 32 == 0.
    B, C, H, W = 2, 64, 16, 16

    key = jax.random.PRNGKey(0)
    keys = jax.random.split(key, 12)
    x = jax.random.normal(keys[0], (B, C, H, W), jnp.float32)

    w_scale = 1.0 / jnp.sqrt(jnp.float32(C))
    gamma = 1.0 + 0.1 * jax.random.normal(keys[1], (C,), jnp.float32)
    beta = 0.1 * jax.random.normal(keys[2], (C,), jnp.float32)

    def mk_w(k):
        return w_scale * jax.random.normal(k, (C, C), jnp.float32)

    def mk_b(k):
        return 0.1 * jax.random.normal(k, (C,), jnp.float32)

    wq, bq = mk_w(keys[3]), mk_b(keys[4])
    wk, bk = mk_w(keys[5]), mk_b(keys[6])
    wv, bv = mk_w(keys[7]), mk_b(keys[8])
    wp, bp = mk_w(keys[9]), mk_b(keys[10])
    params = (gamma, beta, wq, bq, wk, bk, wv, bv, wp, bp)

    # tq=tk=128 exercises the flash tiling (2 q-tiles x 2 kv-tiles per image).
    out = attn_block_forward(x, params, tq=128, tk=128)
    out = jax.block_until_ready(out)

    ref = attn_block_reference(x, params)
    assert out.shape == x.shape
    max_diff = float(jnp.max(jnp.abs(out - ref)))
    # bf16 MXU operands (f32 accumulation) + approx softmax reciprocal -> loose tolerance.
    assert jnp.allclose(out, ref, atol=7.5e-2, rtol=7.5e-2), f"max abs diff {max_diff}"

    print("KERNEL_OK")
</pallas_src>

<mosaic_0001>
module attributes {stable_mosaic.version = 11 : i64} {
  func.func @_norm_qkv_kernel(%arg0: i32, %arg1: memref<1x256x128xf32, #tpu.memory_space<vmem>>, %arg2: memref<128x128xf32, #tpu.memory_space<vmem>>, %arg3: memref<1x128xf32, #tpu.memory_space<vmem>>, %arg4: memref<1x128xf32, #tpu.memory_space<vmem>>, %arg5: memref<128x384xbf16, #tpu.memory_space<vmem>>, %arg6: memref<1x384xf32, #tpu.memory_space<vmem>>, %arg7: memref<1x256x384xbf16, #tpu.memory_space<vmem>>) attributes {dimension_semantics = [#tpu.dimension_semantics<parallel>], iteration_bounds = array<i64: 2>, scalar_prefetch = 0 : i64, scratch_operands = 0 : i64, tpu.core_type = #tpu.core_type<tc>, window_params = [{transform_indices = @transform_0, window_bounds = array<i64: 1, 256, 128>}, {pipeline_mode = #tpu.pipeline_mode<synchronous>, transform_indices = @transform_1, window_bounds = array<i64: 128, 128>}, {pipeline_mode = #tpu.pipeline_mode<synchronous>, transform_indices = @transform_2, window_bounds = array<i64: 1, 128>}, {pipeline_mode = #tpu.pipeline_mode<synchronous>, transform_indices = @transform_3, window_bounds = array<i64: 1, 128>}, {pipeline_mode = #tpu.pipeline_mode<synchronous>, transform_indices = @transform_4, window_bounds = array<i64: 128, 384>}, {pipeline_mode = #tpu.pipeline_mode<synchronous>, transform_indices = @transform_5, window_bounds = array<i64: 1, 384>}, {transform_indices = @transform_6, window_bounds = array<i64: 1, 256, 384>}]} {
    %c0 = arith.constant 0 : index
    %c0_0 = arith.constant 0 : index
    %c0_1 = arith.constant 0 : index
    %0 = vector.load %arg1[%c0, %c0_0, %c0_1] : memref<1x256x128xf32, #tpu.memory_space<vmem>>, vector<1x256x128xf32>
    %1 = vector.shape_cast %0 : vector<1x256x128xf32> to vector<256x128xf32>
    %c0_2 = arith.constant 0 : index
    %c0_3 = arith.constant 0 : index
    %2 = vector.load %arg2[%c0_2, %c0_3] : memref<128x128xf32, #tpu.memory_space<vmem>>, vector<128x128xf32>
    %cst = arith.constant dense<0.000000e+00> : vector<128xf32>
    %3 = vector.multi_reduction <add>, %1, %cst [0] : vector<256x128xf32> to vector<128xf32>
    %4 = vector.shape_cast %3 : vector<128xf32> to vector<1x128xf32>
    %cst_4 = arith.constant dense<0.000000e+00> : vector<1x128xf32>
    %5 = tpu.matmul %4, %2, %cst_4 {dimension_numbers = #tpu.dot_dimension_numbers<[1], [0], [0], [1], [0, 0, 1, 1], [], []>} : vector<1x128xf32>, vector<128x128xf32>, vector<1x128xf32> -> vector<1x128xf32>
    %cst_5 = arith.constant 0.001953125 : f32
    %6 = vector.broadcast %cst_5 : f32 to vector<1x128xf32>
    %7 = arith.mulf %5, %6 : vector<1x128xf32>
    %8 = vector.broadcast %7 : vector<1x128xf32> to vector<256x128xf32>
    %9 = arith.subf %1, %8 : vector<256x128xf32>
    %10 = arith.mulf %9, %9 : vector<256x128xf32>
    %cst_6 = arith.constant dense<0.000000e+00> : vector<128xf32>
    %11 = vector.multi_reduction <add>, %10, %cst_6 [0] : vector<256x128xf32> to vector<128xf32>
    %12 = vector.shape_cast %11 : vector<128xf32> to vector<1x128xf32>
    %cst_7 = arith.constant dense<0.000000e+00> : vector<1x128xf32>
    %13 = tpu.matmul %12, %2, %cst_7 {dimension_numbers = #tpu.dot_dimension_numbers<[1], [0], [0], [1], [0, 0, 1, 1], [], []>} : vector<1x128xf32>, vector<128x128xf32>, vector<1x128xf32> -> vector<1x128xf32>
    %cst_8 = arith.constant 0.001953125 : f32
    %14 = vector.broadcast %cst_8 : f32 to vector<1x128xf32>
    %15 = arith.mulf %13, %14 : vector<1x128xf32>
    %cst_9 = arith.constant 9.99999997E-7 : f32
    %16 = vector.broadcast %cst_9 : f32 to vector<1x128xf32>
    %17 = arith.addf %15, %16 : vector<1x128xf32>
    %18 = math.rsqrt %17 : vector<1x128xf32>
    %19 = vector.broadcast %18 : vector<1x128xf32> to vector<256x128xf32>
    %20 = arith.mulf %9, %19 : vector<256x128xf32>
    %c0_10 = arith.constant 0 : index
    %c0_11 = arith.constant 0 : index
    %21 = vector.load %arg3[%c0_10, %c0_11] : memref<1x128xf32, #tpu.memory_space<vmem>>, vector<1x128xf32>
    %22 = vector.broadcast %21 : vector<1x128xf32> to vector<256x128xf32>
    %23 = arith.mulf %20, %22 : vector<256x128xf32>
    %c0_12 = arith.constant 0 : index
    %c0_13 = arith.constant 0 : index
    %24 = vector.load %arg4[%c0_12, %c0_13] : memref<1x128xf32, #tpu.memory_space<vmem>>, vector<1x128xf32>
    %25 = vector.broadcast %24 : vector<1x128xf32> to vector<256x128xf32>
    %26 = arith.addf %23, %25 : vector<256x128xf32>
    %27 = arith.truncf %26 : vector<256x128xf32> to vector<256x128xbf16>
    %c0_14 = arith.constant 0 : index
    %c0_15 = arith.constant 0 : index
    %28 = vector.load %arg5[%c0_14, %c0_15] : memref<128x384xbf16, #tpu.memory_space<vmem>>, vector<128x384xbf16>
    %cst_16 = arith.constant dense<0.000000e+00> : vector<256x384xf32>
    %29 = tpu.matmul %27, %28, %cst_16 {dimension_numbers = #tpu.dot_dimension_numbers<[1], [0], [0], [1], [0, 0, 1, 1], [], []>} : vector<256x128xbf16>, vector<128x384xbf16>, vector<256x384xf32> -> vector<256x384xf32>
    %c0_17 = arith.constant 0 : index
    %c0_18 = arith.constant 0 : index
    %30 = vector.load %arg6[%c0_17, %c0_18] : memref<1x384xf32, #tpu.memory_space<vmem>>, vector<1x384xf32>
    %31 = vector.broadcast %30 : vector<1x384xf32> to vector<256x384xf32>
    %32 = arith.addf %29, %31 : vector<256x384xf32>
    %33 = arith.truncf %32 : vector<256x384xf32> to vector<256x384xbf16>
    %c0_19 = arith.constant 0 : index
    %c0_20 = arith.constant 0 : index
    %c0_21 = arith.constant 0 : index
    %34 = vector.load %arg7[%c0_19, %c0_20, %c0_21] : memref<1x256x384xbf16, #tpu.memory_space<vmem>>, vector<1x256x384xbf16>
    %35 = vector.shape_cast %34 : vector<1x256x384xbf16> to vector<256x384xbf16>
    %36 = vector.shape_cast %33 : vector<256x384xbf16> to vector<1x256x384xbf16>
    tpu.vector_store %arg7[%c0_19, %c0_20, %c0_21], %36 {strides = array<i32>} : memref<1x256x384xbf16, #tpu.memory_space<vmem>>, vector<1x256x384xbf16>,
    return
  }
  func.func @transform_0(%arg0: i32) -> (i32, i32, i32) {
    %c0_i32 = arith.constant 0 : i32
    %c0_i32_0 = arith.constant 0 : i32
    %c0_i32_1 = arith.constant 0 : i32
    return %arg0, %c0_i32, %c0_i32_0 : i32, i32, i32
  }
  func.func @transform_1(%arg0: i32) -> (i32, i32) {
    %c0_i32 = arith.constant 0 : i32
    %c0_i32_0 = arith.constant 0 : i32
    %c0_i32_1 = arith.constant 0 : i32
    return %c0_i32, %c0_i32_0 : i32, i32
  }
  func.func @transform_2(%arg0: i32) -> (i32, i32) {
    %c0_i32 = arith.constant 0 : i32
    %c0_i32_0 = arith.constant 0 : i32
    %c0_i32_1 = arith.constant 0 : i32
    return %c0_i32, %c0_i32_0 : i32, i32
  }
  func.func @transform_3(%arg0: i32) -> (i32, i32) {
    %c0_i32 = arith.constant 0 : i32
    %c0_i32_0 = arith.constant 0 : i32
    %c0_i32_1 = arith.constant 0 : i32
    return %c0_i32, %c0_i32_0 : i32, i32
  }
  func.func @transform_4(%arg0: i32) -> (i32, i32) {
    %c0_i32 = arith.constant 0 : i32
    %c0_i32_0 = arith.constant 0 : i32
    %c0_i32_1 = arith.constant 0 : i32
    return %c0_i32, %c0_i32_0 : i32, i32
  }
  func.func @transform_5(%arg0: i32) -> (i32, i32) {
    %c0_i32 = arith.constant 0 : i32
    %c0_i32_0 = arith.constant 0 : i32
    %c0_i32_1 = arith.constant 0 : i32
    return %c0_i32, %c0_i32_0 : i32, i32
  }
  func.func @transform_6(%arg0: i32) -> (i32, i32, i32) {
    %c0_i32 = arith.constant 0 : i32
    %c0_i32_0 = arith.constant 0 : i32
    %c0_i32_1 = arith.constant 0 : i32
    return %arg0, %c0_i32, %c0_i32_0 : i32, i32, i32
  }
}

</mosaic_0001>

<llo_original>
// kernel: tpu_custom_call.1
$region0: #{tpu_custom_call.1}
  #allocation0 [shape = 'u32[]', space=smem, size = 0x4, offset = 0x4, fixed_abs, tag = 'smem constant byte address 0x4 - core index']
  #allocation1 [shape = 'u32[144,128]{1,0:T(1,128)}', space=vmem, size = 0x12000, scoped, tag = 'internal scratch']
  %s0 = inlined_call_operand.hbm [shape: f32[2,256,128], index: 0, kind: input, shape index: {}]
  %s1 = inlined_call_operand.hbm [shape: f32[128,128], index: 1, kind: input, shape index: {}]
  %s2 = inlined_call_operand.vmem [shape: f32[1,128], index: 2, kind: input, shape index: {}]
  %s3 = inlined_call_operand.vmem [shape: f32[1,128], index: 3, kind: input, shape index: {}]
  %s4 = inlined_call_operand.hbm [shape: bf16[128,384], index: 4, kind: input, shape index: {}]
  %s5 = inlined_call_operand.vmem [shape: f32[1,384], index: 5, kind: input, shape index: {}]
  %s6 = inlined_call_operand.hbm [shape: bf16[2,256,384], index: 6, kind: output, shape index: {}]
  %s7 = sld [smem:[#allocation0]]
  $region69: #{tpu_custom_call.1} parent=0
    _
  %s9 = ssub.s32 1, %s7
  %s10 = scalar_select 0, %s9, %s7
  $region1: #{tpu_custom_call.1} parent=0
    #allocation2 [shape = 'u8[262144]{0}', space=vmem, size = 0x40000, scoped, tag = 'input window, operand 0']
    #allocation3 [shape = 's32[2]{0}', space=sflag, size = 0x8, scoped, tag = 'scoped memory for tpu_custom_call.1']
    #allocation4 [shape = 's32[2]{0}', space=sflag, size = 0x8, scoped, tag = 'scoped memory for tpu_custom_call.1']
    #allocation5 [shape = 'u8[65536]{0}', space=vmem, size = 0x10000, scoped, tag = 'input window, operand 1, single buffered']
    #allocation6 [shape = 's32[1]{0}', space=sflag, size = 0x4, scoped, tag = 'scoped memory for tpu_custom_call.1']
    #allocation7 [shape = 'u8[98304]{0}', space=vmem, size = 0x18000, scoped, tag = 'input window, operand 4, single buffered']
    #allocation8 [shape = 'u8[393216]{0}', space=vmem, size = 0x60000, scoped, tag = 'output window, operand 0']
    %11 = vsyncpa [#allocation3], 0
    %s12 = scalar_lea.sflag [#allocation3], 1
    %13 = vsyncpa %s12, 0
    %14 = vsyncpa [#allocation6], 0
    %15 = vsyncpa [#allocation4], 0
    %s16 = scalar_lea.sflag [#allocation4], 1
    %17 = vsyncpa %s16, 0
    loop: start=0, step=1, limit=4
    $region2: #{tpu_custom_call.1} parent=1 // loop_pre_header
      _
    $region3: #{tpu_custom_call.1} parent=1 // loop_header
      %s19 = sphi 0, %s23
      %p20 = scmp.ge.s32.totalorder %s19, 4
      %s29 = sphi 0, %s31
      %s32 = sphi 0, %s29
      %s33 = sphi 0, %s32
      %s49 = sphi 0, %s33
      %s53 = sphi 0, %s53
      %s55 = sphi 0, %s53
      %s56 = sphi 0, %s55
      %s70 = sphi 0, %s56
      %s74 = sphi 0, %s74
      %s76 = sphi 0, %s74
      %s77 = sphi 0, %s76
      %s91 = sphi 0, %s77
      %s95 = sphi 0, %s95
      %s97 = sphi 0, %s95
      %s98 = sphi 0, %s97
      %s112 = sphi 0, %s98
      %s116 = sphi 0, %s116
      %s118 = sphi 0, %s116
      %s119 = sphi 0, %s118
      %s133 = sphi 0, %s119
      %s137 = sphi 0, %s137
      %s139 = sphi 0, %s137
      %s140 = sphi 0, %s139
      %s154 = sphi 0, %s140
      %s160 = sphi 0, %s162
      %s163 = sphi 0, %s160
      %s164 = sphi 0, %s163
      %s180 = sphi 0, %s164
    $region4: #{tpu_custom_call.1} parent=1 // loop_header_branch
      %22 = sbr.rel (%p20) target = $region8
    $region5: #{tpu_custom_call.1} parent=1 // loop_body
      %s24 = ssub.s32 %s19, 1
      %s25 = ssub.s32 %s19, 2
      %s26 = sadd.s32 %s19, 1
      %s27 = ssub.s32 %s19, %s26
      %p28 = scmp.eq.s32.totalorder %s27, 0
      %s30 = sadd.s32 %s29, 1
      %s31 = scalar_select %p28, %s29, %s30
      %p34 = pneg %p28
      %p35 = scmp.eq.s32.totalorder %s19, 1
      %p36 = por %p34, %p35
      %p37 = scmp.ne.s32.totalorder %s29, %s32
      %p38 = scmp.eq.s32.totalorder %s19, 0
      %p39 = por %p37, %p38
      %p40 = scmp.ne.s32.totalorder %s29, %s32
      %p41 = scmp.eq.s32.totalorder %s24, 1
      %p42 = por %p40, %p41
      %p43 = scmp.ne.s32.totalorder %s32, %s33
      %p44 = scmp.eq.s32.totalorder %s24, 0
      %p45 = por %p43, %p44
      %p46 = scmp.ne.s32.totalorder %s32, %s33
      %p47 = scmp.eq.s32.totalorder %s25, 1
      %p48 = por %p46, %p47
      %p50 = scmp.ne.s32.totalorder %s33, %s49
      %p51 = scmp.eq.s32.totalorder %s25, 0
      %p52 = por %p50, %p51
      %s54 = sadd.s32 %s53, 1
      %p57 = scmp.eq.s32.totalorder %s19, 1
      %p58 = scmp.ne.s32.totalorder %s53, %s55
      %p59 = scmp.eq.s32.totalorder %s19, 0
      %p60 = por %p58, %p59
      %p61 = scmp.ne.s32.totalorder %s53, %s55
      %p62 = scmp.eq.s32.totalorder %s24, 1
      %p63 = por %p61, %p62
      %p64 = scmp.ne.s32.totalorder %s55, %s56
      %p65 = scmp.eq.s32.totalorder %s24, 0
      %p66 = por %p64, %p65
      %p67 = scmp.ne.s32.totalorder %s55, %s56
      %p68 = scmp.eq.s32.totalorder %s25, 1
      %p69 = por %p67, %p68
      %p71 = scmp.ne.s32.totalorder %s56, %s70
      %p72 = scmp.eq.s32.totalorder %s25, 0
      %p73 = por %p71, %p72
      %s75 = sadd.s32 %s74, 1
      %p78 = scmp.eq.s32.totalorder %s19, 1
      %p79 = scmp.ne.s32.totalorder %s74, %s76
      %p80 = scmp.eq.s32.totalorder %s19, 0
      %p81 = por %p79, %p80
      %p82 = scmp.ne.s32.totalorder %s74, %s76
      %p83 = scmp.eq.s32.totalorder %s24, 1
      %p84 = por %p82, %p83
      %p85 = scmp.ne.s32.totalorder %s76, %s77
      %p86 = scmp.eq.s32.totalorder %s24, 0
      %p87 = por %p85, %p86
      %p88 = scmp.ne.s32.totalorder %s76, %s77
      %p89 = scmp.eq.s32.totalorder %s25, 1
      %p90 = por %p88, %p89
      %p92 = scmp.ne.s32.totalorder %s77, %s91
      %p93 = scmp.eq.s32.totalorder %s25, 0
      %p94 = por %p92, %p93
      %s96 = sadd.s32 %s95, 1
      %p99 = scmp.eq.s32.totalorder %s19, 1
      %p100 = scmp.ne.s32.totalorder %s95, %s97
      %p101 = scmp.eq.s32.totalorder %s19, 0
      %p102 = por %p100, %p101
      %p103 = scmp.ne.s32.totalorder %s95, %s97
      %p104 = scmp.eq.s32.totalorder %s24, 1
      %p105 = por %p103, %p104
      %p106 = scmp.ne.s32.totalorder %s97, %s98
      %p107 = scmp.eq.s32.totalorder %s24, 0
      %p108 = por %p106, %p107
      %p109 = scmp.ne.s32.totalorder %s97, %s98
      %p110 = scmp.eq.s32.totalorder %s25, 1
      %p111 = por %p109, %p110
      %p113 = scmp.ne.s32.totalorder %s98, %s112
      %p114 = scmp.eq.s32.totalorder %s25, 0
      %p115 = por %p113, %p114
      %s117 = sadd.s32 %s116, 1
      %p120 = scmp.eq.s32.totalorder %s19, 1
      %p121 = scmp.ne.s32.totalorder %s116, %s118
      %p122 = scmp.eq.s32.totalorder %s19, 0
      %p123 = por %p121, %p122
      %p124 = scmp.ne.s32.totalorder %s116, %s118
      %p125 = scmp.eq.s32.totalorder %s24, 1
      %p126 = por %p124, %p125
      %p127 = scmp.ne.s32.totalorder %s118, %s119
      %p128 = scmp.eq.s32.totalorder %s24, 0
      %p129 = por %p127, %p128
      %p130 = scmp.ne.s32.totalorder %s118, %s119
      %p131 = scmp.eq.s32.totalorder %s25, 1
      %p132 = por %p130, %p131
      %p134 = scmp.ne.s32.totalorder %s119, %s133
      %p135 = scmp.eq.s32.totalorder %s25, 0
      %p136 = por %p134, %p135
      %s138 = sadd.s32 %s137, 1
      %p141 = scmp.eq.s32.totalorder %s19, 1
      %p142 = scmp.ne.s32.totalorder %s137, %s139
      %p143 = scmp.eq.s32.totalorder %s19, 0
      %p144 = por %p142, %p143
      %p145 = scmp.ne.s32.totalorder %s137, %s139
      %p146 = scmp.eq.s32.totalorder %s24, 1
      %p147 = por %p145, %p146
      %p148 = scmp.ne.s32.totalorder %s139, %s140
      %p149 = scmp.eq.s32.totalorder %s24, 0
      %p150 = por %p148, %p149
      %p151 = scmp.ne.s32.totalorder %s139, %s140
      %p152 = scmp.eq.s32.totalorder %s25, 1
      %p153 = por %p151, %p152
      %p155 = scmp.ne.s32.totalorder %s140, %s154
      %p156 = scmp.eq.s32.totalorder %s25, 0
      %p157 = por %p155, %p156
      %s158 = ssub.s32 %s19, %s26
      %p159 = scmp.eq.s32.totalorder %s158, 0
      %s161 = sadd.s32 %s160, 1
      %s162 = scalar_select %p159, %s160, %s161
      %p165 = pneg %p159
      %p166 = scmp.eq.s32.totalorder %s19, 1
      %p167 = por %p165, %p166
      %p168 = scmp.ne.s32.totalorder %s160, %s163
      %p169 = scmp.eq.s32.totalorder %s19, 0
      %p170 = por %p168, %p169
      %p171 = scmp.ne.s32.totalorder %s160, %s163
      %p172 = scmp.eq.s32.totalorder %s24, 1
      %p173 = por %p171, %p172
      %p174 = scmp.ne.s32.totalorder %s163, %s164
      %p175 = scmp.eq.s32.totalorder %s24, 0
      %p176 = por %p174, %p175
      %p177 = scmp.ne.s32.totalorder %s163, %s164
      %p178 = scmp.eq.s32.totalorder %s25, 1
      %p179 = por %p177, %p178
      %p181 = scmp.ne.s32.totalorder %s164, %s180
      %p182 = scmp.eq.s32.totalorder %s25, 0
      %p183 = por %p181, %p182
      %p184 = scmp.le.s32.totalorder 1, %s19
      %p185 = scmp.lt.s32.totalorder %s19, 3
      %p186 = pnand %p184, %p185
      %p187 = pneg %p186
      // Predicated region
      $region9: #{tpu_custom_call.1} parent=5 // pred_check
        _
      $region10: #{tpu_custom_call.1} parent=5 // pred_check_branch
        %189 = sbr.rel (%p186) target = $region12
      $region11: #{tpu_custom_call.1} parent=5 // pred_region
        %s190 = ssub.s32 %s19, 1
        // Predicated region
        $region13: #{tpu_custom_call.1} parent=11 // pred_check
          %p191 = pneg %p66
        $region14: #{tpu_custom_call.1} parent=11 // pred_check_branch
          %193 = sbr.rel (%p191) target = $region16
        $region15: #{tpu_custom_call.1} parent=11 // pred_region
          %s195 = ssub.s32 2048, 2048
          %196 = vsyncadd [#allocation6], %s195
          %s197 = sshll.u32 [#allocation5], 4
          %s198 = int_to_ptr.vmem [resolvable:$true] %s197
          %203 = dma.hbm_to_vmem [thread:$0]  %s1, 2048, %s198, [#allocation6], 128, 128, 8
        $region16: #{tpu_custom_call.1} parent=11 // pred_fallthru
          _
        // Predicated region
        $region17: #{tpu_custom_call.1} parent=11 // pred_check
          %p204 = pneg %p87
        $region18: #{tpu_custom_call.1} parent=11 // pred_check_branch
          %206 = sbr.rel (%p204) target = $region20
        $region19: #{tpu_custom_call.1} parent=11 // pred_region
          _
        $region20: #{tpu_custom_call.1} parent=11 // pred_fallthru
          _
        // Predicated region
        $region21: #{tpu_custom_call.1} parent=11 // pred_check
          %p207 = pneg %p108
        $region22: #{tpu_custom_call.1} parent=11 // pred_check_branch
          %209 = sbr.rel (%p207) target = $region24
        $region23: #{tpu_custom_call.1} parent=11 // pred_region
          _
        $region24: #{tpu_custom_call.1} parent=11 // pred_fallthru
          _
        // Predicated region
        $region25: #{tpu_custom_call.1} parent=11 // pred_check
          %p210 = pneg %p129
        $region26: #{tpu_custom_call.1} parent=11 // pred_check_branch
          %212 = sbr.rel (%p210) target = $region28
        $region27: #{tpu_custom_call.1} parent=11 // pred_region
          %s214 = ssub.s32 3072, 3072
          %215 = vsyncadd [#allocation6], %s214
          %s216 = sshll.u32 [#allocation7], 4
          %s217 = int_to_ptr.vmem [resolvable:$true] %s216
          %222 = dma.hbm_to_vmem [thread:$0]  %s4, 3072, %s217, [#allocation6], 192, 192, 12
        $region28: #{tpu_custom_call.1} parent=11 // pred_fallthru
          _
        // Predicated region
        $region29: #{tpu_custom_call.1} parent=11 // pred_check
          %p223 = pneg %p150
        $region30: #{tpu_custom_call.1} parent=11 // pred_check_branch
          %225 = sbr.rel (%p223) target = $region32
        $region31: #{tpu_custom_call.1} parent=11 // pred_region
          _
        $region32: #{tpu_custom_call.1} parent=11 // pred_fallthru
          _
      $region12: #{tpu_custom_call.1} parent=5 // pred_fallthru
        _
      %p226 = scmp.lt.s32.totalorder %s19, 2
      // Predicated region
      $region33: #{tpu_custom_call.1} parent=5 // pred_check
        %p227 = pneg %p226
      $region34: #{tpu_custom_call.1} parent=5 // pred_check_branch
        %229 = sbr.rel (%p227) target = $region36
      $region35: #{tpu_custom_call.1} parent=5 // pred_region
        // Predicated region
        $region37: #{tpu_custom_call.1} parent=35 // pred_check
          %p230 = pneg %p39
        $region38: #{tpu_custom_call.1} parent=35 // pred_check_branch
          %232 = sbr.rel (%p230) target = $region40
        $region39: #{tpu_custom_call.1} parent=35 // pred_region
          %s233 = sand.u32 %s29, 1
          %s234 = scalar_lea.sflag [#allocation3], %s233
          %s235 = sand.u32 %s29, 1
          %s236 = smul.addr %s235, 256
          %s237 = scalar_lea.vmem [#allocation2], %s236
          %s239 = ssub.s32 4096, 4096
          %240 = vsyncadd %s234, %s239
          %s241 = smul.addr %s19, 32
          %s242 = smul.addr %s241, 128
          %s243 = scalar_lea.hbm %s0, %s242
          %s244 = sshll.u32 %s237, 4
          %s245 = int_to_ptr.vmem [resolvable:$true] %s244
          %250 = dma.hbm_to_vmem [thread:$0]  %s243, 4096, %s245, %s234, 128, 128, 8
        $region40: #{tpu_custom_call.1} parent=35 // pred_fallthru
          _
      $region36: #{tpu_custom_call.1} parent=5 // pred_fallthru
        _
      %p251 = scmp.le.s32.totalorder 1, %s19
      %p252 = scmp.lt.s32.totalorder %s19, 3
      %p253 = pnand %p251, %p252
      %p254 = pneg %p253
      // Predicated region
      $region41: #{tpu_custom_call.1} parent=5 // pred_check
        _
      $region42: #{tpu_custom_call.1} parent=5 // pred_check_branch
        %256 = sbr.rel (%p253) target = $region44
      $region43: #{tpu_custom_call.1} parent=5 // pred_region
        %s257 = ssub.s32 %s19, 1
        %s258 = sand.u32 %s32, 1
        %s259 = scalar_lea.sflag [#allocation3], %s258
        %s260 = sand.u32 %s32, 1
        %s261 = smul.addr %s260, 256
        %s262 = scalar_lea.vmem [#allocation2], %s261
        // Predicated region
        $region45: #{tpu_custom_call.1} parent=43 // pred_check
          %p263 = pneg %p45
        $region46: #{tpu_custom_call.1} parent=43 // pred_check_branch
          %265 = sbr.rel (%p263) target = $region48
        $region47: #{tpu_custom_call.1} parent=43 // pred_region
          %266 = dma.done %s259, 4096
        $region48: #{tpu_custom_call.1} parent=43 // pred_fallthru
          _
        // Predicated region
        $region49: #{tpu_custom_call.1} parent=43 // pred_check
          %p267 = pneg %p66
        $region50: #{tpu_custom_call.1} parent=43 // pred_check_branch
          %269 = sbr.rel (%p267) target = $region52
        $region51: #{tpu_custom_call.1} parent=43 // pred_region
          %270 = dma.done [#allocation6], 2048
        $region52: #{tpu_custom_call.1} parent=43 // pred_fallthru
          _
        // Predicated region
        $region53: #{tpu_custom_call.1} parent=43 // pred_check
          %p271 = pneg %p129
        $region54: #{tpu_custom_call.1} parent=43 // pred_check_branch
          %273 = sbr.rel (%p271) target = $region56
        $region55: #{tpu_custom_call.1} parent=43 // pred_region
          %274 = dma.done [#allocation6], 3072
        $region56: #{tpu_custom_call.1} parent=43 // pred_fallthru
          _
        %s275 = sand.u32 %s32, 1
        %s276 = scalar_lea.sflag [#allocation3], %s275
        %s277 = sand.u32 %s32, 1
        %s278 = smul.addr %s277, 256
        %s279 = scalar_lea.vmem [#allocation2], %s278
        %p280 = pneg %p45
        %p281 = pneg %p42
        %p282 = pneg %p66
        %p283 = pneg %p63
        %p284 = pneg %p87
        %p285 = pneg %p84
        %p286 = pneg %p108
        %p287 = pneg %p105
        %p288 = pneg %p129
        %p289 = pneg %p126
        %p290 = pneg %p150
        %p291 = pneg %p147
        %p292 = pneg %p176
        %p293 = pneg %p173
        %s294 = sand.u32 %s163, 1
        %s295 = scalar_lea.sflag [#allocation4], %s294
        %s296 = sand.u32 %s163, 1
        %s297 = smul.addr %s296, 384
        %s298 = scalar_lea.vmem [#allocation8], %s297
        %v300 = vld [vmem:[%s262] sm:$0xff]
        %v301 = vld [vmem:[%s262 + $0x8] sm:$0xff]
        %v302 = vld [vmem:[%s262 + $0x10] sm:$0xff]
        %v303 = vld [vmem:[%s262 + $0x18] sm:$0xff]
        %v304 = vld [vmem:[%s262 + $0x20] sm:$0xff]
        %v305 = vld [vmem:[%s262 + $0x28] sm:$0xff]
        %v306 = vld [vmem:[%s262 + $0x30] sm:$0xff]
        %v307 = vld [vmem:[%s262 + $0x38] sm:$0xff]
        %v308 = vld [vmem:[%s262 + $0x40] sm:$0xff]
        %v309 = vld [vmem:[%s262 + $0x48] sm:$0xff]
        %v310 = vld [vmem:[%s262 + $0x50] sm:$0xff]
        %v311 = vld [vmem:[%s262 + $0x58] sm:$0xff]
        %v312 = vld [vmem:[%s262 + $0x60] sm:$0xff]
        %v313 = vld [vmem:[%s262 + $0x68] sm:$0xff]
        %v314 = vld [vmem:[%s262 + $0x70] sm:$0xff]
        %v315 = vld [vmem:[%s262 + $0x78] sm:$0xff]
        %v316 = vld [vmem:[%s262 + $0x80] sm:$0xff]
        %v317 = vld [vmem:[%s262 + $0x88] sm:$0xff]
        %v318 = vld [vmem:[%s262 + $0x90] sm:$0xff]
        %v319 = vld [vmem:[%s262 + $0x98] sm:$0xff]
        %v320 = vld [vmem:[%s262 + $0xa0] sm:$0xff]
        %v321 = vld [vmem:[%s262 + $0xa8] sm:$0xff]
        %v322 = vld [vmem:[%s262 + $0xb0] sm:$0xff]
        %v323 = vld [vmem:[%s262 + $0xb8] sm:$0xff]
        %v324 = vld [vmem:[%s262 + $0xc0] sm:$0xff]
        %v325 = vld [vmem:[%s262 + $0xc8] sm:$0xff]
        %v326 = vld [vmem:[%s262 + $0xd0] sm:$0xff]
        %v327 = vld [vmem:[%s262 + $0xd8] sm:$0xff]
        %v328 = vld [vmem:[%s262 + $0xe0] sm:$0xff]
        %v329 = vld [vmem:[%s262 + $0xe8] sm:$0xff]
        %v330 = vld [vmem:[%s262 + $0xf0] sm:$0xff]
        %v331 = vld [vmem:[%s262 + $0xf8] sm:$0xff]
        %v332 = vld [vmem:[#allocation5] sm:$0xff]
        %v333 = vld [vmem:[#allocation5 + $0x8] sm:$0xff]
        %v334 = vld [vmem:[#allocation5 + $0x10] sm:$0xff]
        %v335 = vld [vmem:[#allocation5 + $0x18] sm:$0xff]
        %v336 = vld [vmem:[#allocation5 + $0x20] sm:$0xff]
        %v337 = vld [vmem:[#allocation5 + $0x28] sm:$0xff]
        %v338 = vld [vmem:[#allocation5 + $0x30] sm:$0xff]
        %v339 = vld [vmem:[#allocation5 + $0x38] sm:$0xff]
        %v340 = vld [vmem:[#allocation5 + $0x40] sm:$0xff]
        %v341 = vld [vmem:[#allocation5 + $0x48] sm:$0xff]
        %v342 = vld [vmem:[#allocation5 + $0x50] sm:$0xff]
        %v343 = vld [vmem:[#allocation5 + $0x58] sm:$0xff]
        %v344 = vld [vmem:[#allocation5 + $0x60] sm:$0xff]
        %v345 = vld [vmem:[#allocation5 + $0x68] sm:$0xff]
        %v346 = vld [vmem:[#allocation5 + $0x70] sm:$0xff]
        %v347 = vld [vmem:[#allocation5 + $0x78] sm:$0xff]
        %v348 = vadd.f32 %v300, %v301
        %v349 = vadd.f32 %v348, %v302
        %v350 = vadd.f32 %v349, %v303
        %v351 = vadd.f32 %v350, %v304
        %v352 = vadd.f32 %v351, %v305
        %v353 = vadd.f32 %v352, %v306
        %v354 = vadd.f32 %v353, %v307
        %v355 = vadd.f32 %v354, %v308
        %v356 = vadd.f32 %v355, %v309
        %v357 = vadd.f32 %v356, %v310
        %v358 = vadd.f32 %v357, %v311
        %v359 = vadd.f32 %v358, %v312
        %v360 = vadd.f32 %v359, %v313
        %v361 = vadd.f32 %v360, %v314
        %v362 = vadd.f32 %v361, %v315
        %v363 = vadd.f32 %v362, %v316
        %v364 = vadd.f32 %v363, %v317
        %v365 = vadd.f32 %v364, %v318
        %v366 = vadd.f32 %v365, %v319
        %v367 = vadd.f32 %v366, %v320
        %v368 = vadd.f32 %v367, %v321
        %v369 = vadd.f32 %v368, %v322
        %v370 = vadd.f32 %v369, %v323
        %v371 = vadd.f32 %v370, %v324
        %v372 = vadd.f32 %v371, %v325
        %v373 = vadd.f32 %v372, %v326
        %v374 = vadd.f32 %v373, %v327
        %v375 = vadd.f32 %v374, %v328
        %v376 = vadd.f32 %v375, %v329
        %v377 = vadd.f32 %v376, %v330
        %v378 = vadd.f32 %v377, %v331
        %v379 = vrot.slane %v378, 4
        %v380 = vadd.f32 %v378, %v379
        %v381 = vrot.slane %v380, 2
        %v382 = vadd.f32 %v380, %v381
        %v383 = vrot.slane %v382, 1
        %v384 = vadd.f32 %v382, %v383
        %385 = vmatprep.subr.mxu0 0.0
        %386 = vmatpush1.msra.mxu0 %v347
        %387 = vmatprep.subr.mxu0 0.0
        %388 = vmatpush1.msra.mxu0 %v346
        %389 = vmatprep.subr.mxu0 0.0
        %390 = vmatpush1.msra.mxu0 %v345
        %391 = vmatprep.subr.mxu0 0.0
        %392 = vmatpush1.msra.mxu0 %v344
        %393 = vmatprep.subr.mxu0 0.0
        %394 = vmatpush1.msra.mxu0 %v343
        %395 = vmatprep.subr.mxu0 0.0
        %396 = vmatpush1.msra.mxu0 %v342
        %397 = vmatprep.subr.mxu0 0.0
        %398 = vmatpush1.msra.mxu0 %v341
        %399 = vmatprep.subr.mxu0 0.0
        %400 = vmatpush1.msra.mxu0 %v340
        %401 = vmatprep.subr.mxu0 0.0
        %402 = vmatpush1.msra.mxu0 %v339
        %403 = vmatprep.subr.mxu0 0.0
        %404 = vmatpush1.msra.mxu0 %v338
        %405 = vmatprep.subr.mxu0 0.0
        %406 = vmatpush1.msra.mxu0 %v337
        %407 = vmatprep.subr.mxu0 0.0
        %408 = vmatpush1.msra.mxu0 %v336
        %409 = vmatprep.subr.mxu0 0.0
        %410 = vmatpush1.msra.mxu0 %v335
        %411 = vmatprep.subr.mxu0 0.0
        %412 = vmatpush1.msra.mxu0 %v334
        %413 = vmatprep.subr.mxu0 0.0
        %414 = vmatpush1.msra.mxu0 %v333
        %415 = vmatprep.subr.mxu0 0.0
        %416 = vmatpush1.msra.mxu0 %v332
        %417 = vmatprep.subr.mxu0 0.0
        %418 = vmatpush2.msra.mxu0 0.0
        %419 = vmatprep.subr.mxu0 0.0
        %420 = vmatpush2.msra.mxu0 0.0
        %421 = vmatprep.subr.mxu0 0.0
        %422 = vmatpush2.msra.mxu0 0.0
        %423 = vmatprep.subr.mxu0 0.0
        %424 = vmatpush2.msra.mxu0 0.0
        %425 = vmatprep.subr.mxu0 0.0
        %426 = vmatpush2.msra.mxu0 0.0
        %427 = vmatprep.subr.mxu0 0.0
        %428 = vmatpush2.msra.mxu0 0.0
        %429 = vmatprep.subr.mxu0 0.0
        %430 = vmatpush2.msra.mxu0 0.0
        %431 = vmatprep.subr.mxu0 0.0
        %432 = vmatpush2.msra.mxu0 0.0
        %433 = vmatprep.subr.mxu0 0.0
        %434 = vmatpush2.msra.mxu0 0.0
        %435 = vmatprep.subr.mxu0 0.0
        %436 = vmatpush2.msra.mxu0 0.0
        %437 = vmatprep.subr.mxu0 0.0
        %438 = vmatpush2.msra.mxu0 0.0
        %439 = vmatprep.subr.mxu0 0.0
        %440 = vmatpush2.msra.mxu0 0.0
        %441 = vmatprep.subr.mxu0 0.0
        %442 = vmatpush2.msra.mxu0 0.0
        %443 = vmatprep.subr.mxu0 0.0
        %444 = vmatpush2.msra.mxu0 0.0
        %445 = vmatprep.subr.mxu0 0.0
        %446 = vmatpush2.msra.mxu0 0.0
        %447 = vmatprep.subr.mxu0 0.0
        %448 = vmatpush2.msra.mxu0 0.0
        %449 = vmatprep.mubr.f32.mxu0 0.0
        %450 = vmatmul.mubr.f32.gmra.mxu0 %v384
        %v451 = vpop.f32.mrf.mxu0
        %v452 = vadd.f32 0.0, %v451
        %v453 = vpop.f32.mrf.mxu0
        %454 = vdwg.mxu0
        %v455 = vmul.f32 %v452, 0.001953125
        %v456 = vlaneseq
        %v457 = vshrl.u32 %v456, 7
        %v458 = vsub.s32 0, %v457
        %v459 = vrot.slane %v455, %v458
        %v460 = vsub.f32 %v300, %v459
        %v461 = vsub.f32 %v301, %v459
        %v462 = vsub.f32 %v302, %v459
        %v463 = vsub.f32 %v303, %v459
        %v464 = vsub.f32 %v304, %v459
        %v465 = vsub.f32 %v305, %v459
        %v466 = vsub.f32 %v306, %v459
        %v467 = vsub.f32 %v307, %v459
        %v468 = vsub.f32 %v308, %v459
        %v469 = vsub.f32 %v309, %v459
        %v470 = vsub.f32 %v310, %v459
        %v471 = vsub.f32 %v311, %v459
        %v472 = vsub.f32 %v312, %v459
        %v473 = vsub.f32 %v313, %v459
        %v474 = vsub.f32 %v314, %v459
        %v475 = vsub.f32 %v315, %v459
        %v476 = vsub.f32 %v316, %v459
        %v477 = vsub.f32 %v317, %v459
        %v478 = vsub.f32 %v318, %v459
        %v479 = vsub.f32 %v319, %v459
        %v480 = vsub.f32 %v320, %v459
        %v481 = vsub.f32 %v321, %v459
        %v482 = vsub.f32 %v322, %v459
        %v483 = vsub.f32 %v323, %v459
        %v484 = vsub.f32 %v324, %v459
        %v485 = vsub.f32 %v325, %v459
        %v486 = vsub.f32 %v326, %v459
        %v487 = vsub.f32 %v327, %v459
        %v488 = vsub.f32 %v328, %v459
        %v489 = vsub.f32 %v329, %v459
        %v490 = vsub.f32 %v330, %v459
        %v491 = vsub.f32 %v331, %v459
        %v492 = vmul.f32 %v460, %v460
        %v493 = vmul.f32 %v461, %v461
        %v494 = vmul.f32 %v462, %v462
        %v495 = vmul.f32 %v463, %v463
        %v496 = vmul.f32 %v464, %v464
        %v497 = vmul.f32 %v465, %v465
        %v498 = vmul.f32 %v466, %v466
        %v499 = vmul.f32 %v467, %v467
        %v500 = vmul.f32 %v468, %v468
        %v501 = vmul.f32 %v469, %v469
        %v502 = vmul.f32 %v470, %v470
        %v503 = vmul.f32 %v471, %v471
        %v504 = vmul.f32 %v472, %v472
        %v505 = vmul.f32 %v473, %v473
        %v506 = vmul.f32 %v474, %v474
        %v507 = vmul.f32 %v475, %v475
        %v508 = vmul.f32 %v476, %v476
        %v509 = vmul.f32 %v477, %v477
        %v510 = vmul.f32 %v478, %v478
        %v511 = vmul.f32 %v479, %v479
        %v512 = vmul.f32 %v480, %v480
        %v513 = vmul.f32 %v481, %v481
        %v514 = vmul.f32 %v482, %v482
        %v515 = vmul.f32 %v483, %v483
        %v516 = vmul.f32 %v484, %v484
        %v517 = vmul.f32 %v485, %v485
        %v518 = vmul.f32 %v486, %v486
        %v519 = vmul.f32 %v487, %v487
        %v520 = vmul.f32 %v488, %v488
        %v521 = vmul.f32 %v489, %v489
        %v522 = vmul.f32 %v490, %v490
        %v523 = vmul.f32 %v491, %v491
        %v524 = vadd.f32 %v492, %v493
        %v525 = vadd.f32 %v524, %v494
        %v526 = vadd.f32 %v525, %v495
        %v527 = vadd.f32 %v526, %v496
        %v528 = vadd.f32 %v527, %v497
        %v529 = vadd.f32 %v528, %v498
        %v530 = vadd.f32 %v529, %v499
        %v531 = vadd.f32 %v530, %v500
        %v532 = vadd.f32 %v531, %v501
        %v533 = vadd.f32 %v532, %v502
        %v534 = vadd.f32 %v533, %v503
        %v535 = vadd.f32 %v534, %v504
        %v536 = vadd.f32 %v535, %v505
        %v537 = vadd.f32 %v536, %v506
        %v538 = vadd.f32 %v537, %v507
        %v539 = vadd.f32 %v538, %v508
        %v540 = vadd.f32 %v539, %v509
        %v541 = vadd.f32 %v540, %v510
        %v542 = vadd.f32 %v541, %v511
        %v543 = vadd.f32 %v542, %v512
        %v544 = vadd.f32 %v543, %v513
        %v545 = vadd.f32 %v544, %v514
        %v546 = vadd.f32 %v545, %v515
        %v547 = vadd.f32 %v546, %v516
        %v548 = vadd.f32 %v547, %v517
        %v549 = vadd.f32 %v548, %v518
        %v550 = vadd.f32 %v549, %v519
        %v551 = vadd.f32 %v550, %v520
        %v552 = vadd.f32 %v551, %v521
        %v553 = vadd.f32 %v552, %v522
        %v554 = vadd.f32 %v553, %v523
        %v555 = vrot.slane %v554, 4
        %v556 = vadd.f32 %v554, %v555
        %v557 = vrot.slane %v556, 2
        %v558 = vadd.f32 %v556, %v557
        %v559 = vrot.slane %v558, 1
        %v560 = vadd.f32 %v558, %v559
        %561 = vmatprep.subr.mxu0 0.0
        %562 = vmatpush1.msra.mxu0 %v347
        %563 = vmatprep.subr.mxu0 0.0
        %564 = vmatpush1.msra.mxu0 %v346
        %565 = vmatprep.subr.mxu0 0.0
        %566 = vmatpush1.msra.mxu0 %v345
        %567 = vmatprep.subr.mxu0 0.0
        %568 = vmatpush1.msra.mxu0 %v344
        %569 = vmatprep.subr.mxu0 0.0
        %570 = vmatpush1.msra.mxu0 %v343
        %571 = vmatprep.subr.mxu0 0.0
        %572 = vmatpush1.msra.mxu0 %v342
        %573 = vmatprep.subr.mxu0 0.0
        %574 = vmatpush1.msra.mxu0 %v341
        %575 = vmatprep.subr.mxu0 0.0
        %576 = vmatpush1.msra.mxu0 %v340
        %577 = vmatprep.subr.mxu0 0.0
        %578 = vmatpush1.msra.mxu0 %v339
        %579 = vmatprep.subr.mxu0 0.0
        %580 = vmatpush1.msra.mxu0 %v338
        %581 = vmatprep.subr.mxu0 0.0
        %582 = vmatpush1.msra.mxu0 %v337
        %583 = vmatprep.subr.mxu0 0.0
        %584 = vmatpush1.msra.mxu0 %v336
        %585 = vmatprep.subr.mxu0 0.0
        %586 = vmatpush1.msra.mxu0 %v335
        %587 = vmatprep.subr.mxu0 0.0
        %588 = vmatpush1.msra.mxu0 %v334
        %589 = vmatprep.subr.mxu0 0.0
        %590 = vmatpush1.msra.mxu0 %v333
        %591 = vmatprep.subr.mxu0 0.0
        %592 = vmatpush1.msra.mxu0 %v332
        %593 = vmatprep.subr.mxu0 0.0
        %594 = vmatpush2.msra.mxu0 0.0
        %595 = vmatprep.subr.mxu0 0.0
        %596 = vmatpush2.msra.mxu0 0.0
        %597 = vmatprep.subr.mxu0 0.0
        %598 = vmatpush2.msra.mxu0 0.0
        %599 = vmatprep.subr.mxu0 0.0
        %600 = vmatpush2.msra.mxu0 0.0
        %601 = vmatprep.subr.mxu0 0.0
        %602 = vmatpush2.msra.mxu0 0.0
        %603 = vmatprep.subr.mxu0 0.0
        %604 = vmatpush2.msra.mxu0 0.0
        %605 = vmatprep.subr.mxu0 0.0
        %606 = vmatpush2.msra.mxu0 0.0
        %607 = vmatprep.subr.mxu0 0.0
        %608 = vmatpush2.msra.mxu0 0.0
        %609 = vmatprep.subr.mxu0 0.0
        %610 = vmatpush2.msra.mxu0 0.0
        %611 = vmatprep.subr.mxu0 0.0
        %612 = vmatpush2.msra.mxu0 0.0
        %613 = vmatprep.subr.mxu0 0.0
        %614 = vmatpush2.msra.mxu0 0.0
        %615 = vmatprep.subr.mxu0 0.0
        %616 = vmatpush2.msra.mxu0 0.0
        %617 = vmatprep.subr.mxu0 0.0
        %618 = vmatpush2.msra.mxu0 0.0
        %619 = vmatprep.subr.mxu0 0.0
        %620 = vmatpush2.msra.mxu0 0.0
        %621 = vmatprep.subr.mxu0 0.0
        %622 = vmatpush2.msra.mxu0 0.0
        %623 = vmatprep.subr.mxu0 0.0
        %624 = vmatpush2.msra.mxu0 0.0
        %625 = vmatprep.mubr.f32.mxu0 0.0
        %626 = vmatmul.mubr.f32.gmra.mxu0 %v560
        %v627 = vpop.f32.mrf.mxu0
        %v628 = vadd.f32 0.0, %v627
        %v629 = vpop.f32.mrf.mxu0
        %630 = vdwg.mxu0
        %v631 = vmul.f32 %v628, 0.001953125
        %v632 = vadd.f32 %v631, 1e-06
        %v633 = vrsqrt.pop %v632
        %v634 = vlaneseq
        %v635 = vshrl.u32 %v634, 7
        %v636 = vsub.s32 0, %v635
        %v637 = vrot.slane %v633, %v636
        %v638 = vmul.f32 %v460, %v637
        %v639 = vmul.f32 %v461, %v637
        %v640 = vmul.f32 %v462, %v637
        %v641 = vmul.f32 %v463, %v637
        %v642 = vmul.f32 %v464, %v637
        %v643 = vmul.f32 %v465, %v637
        %v644 = vmul.f32 %v466, %v637
        %v645 = vmul.f32 %v467, %v637
        %v646 = vmul.f32 %v468, %v637
        %v647 = vmul.f32 %v469, %v637
        %v648 = vmul.f32 %v470, %v637
        %v649 = vmul.f32 %v471, %v637
        %v650 = vmul.f32 %v472, %v637
        %v651 = vmul.f32 %v473, %v637
        %v652 = vmul.f32 %v474, %v637
        %v653 = vmul.f32 %v475, %v637
        %v654 = vmul.f32 %v476, %v637
        %v655 = vmul.f32 %v477, %v637
        %v656 = vmul.f32 %v478, %v637
        %v657 = vmul.f32 %v479, %v637
        %v658 = vmul.f32 %v480, %v637
        %v659 = vmul.f32 %v481, %v637
        %v660 = vmul.f32 %v482, %v637
        %v661 = vmul.f32 %v483, %v637
        %v662 = vmul.f32 %v484, %v637
        %v663 = vmul.f32 %v485, %v637
        %v664 = vmul.f32 %v486, %v637
        %v665 = vmul.f32 %v487, %v637
        %v666 = vmul.f32 %v488, %v637
        %v667 = vmul.f32 %v489, %v637
        %v668 = vmul.f32 %v490, %v637
        %v669 = vmul.f32 %v491, %v637
        %v670 = vld [vmem:[%s2] sm:$0x1]
        %v672 = vlaneseq
        %v673 = vshrl.u32 %v672, 7
        %v674 = vsub.s32 0, %v673
        %v675 = vrot.slane %v670, %v674
        %v677 = vmul.f32 %v638, %v675
        %v678 = vmul.f32 %v639, %v675
        %v679 = vmul.f32 %v640, %v675
        %v680 = vmul.f32 %v641, %v675
        %v681 = vmul.f32 %v642, %v675
        %v682 = vmul.f32 %v643, %v675
        %v683 = vmul.f32 %v644, %v675
        %v684 = vmul.f32 %v645, %v675
        %v685 = vmul.f32 %v646, %v675
        %v686 = vmul.f32 %v647, %v675
        %v687 = vmul.f32 %v648, %v675
        %v688 = vmul.f32 %v649, %v675
        %v689 = vmul.f32 %v650, %v675
        %v690 = vmul.f32 %v651, %v675
        %v691 = vmul.f32 %v652, %v675
        %v692 = vmul.f32 %v653, %v675
        %v693 = vmul.f32 %v654, %v675
        %v694 = vmul.f32 %v655, %v675
        %v695 = vmul.f32 %v656, %v675
        %v696 = vmul.f32 %v657, %v675
        %v697 = vmul.f32 %v658, %v675
        %v698 = vmul.f32 %v659, %v675
        %v699 = vmul.f32 %v660, %v675
        %v700 = vmul.f32 %v661, %v675
        %v701 = vmul.f32 %v662, %v675
        %v702 = vmul.f32 %v663, %v675
        %v703 = vmul.f32 %v664, %v675
        %v704 = vmul.f32 %v665, %v675
        %v705 = vmul.f32 %v666, %v675
        %v706 = vmul.f32 %v667, %v675
        %v707 = vmul.f32 %v668, %v675
        %v708 = vmul.f32 %v669, %v675
        %v709 = vld [vmem:[%s3] sm:$0x1]
        %v711 = vlaneseq
        %v712 = vshrl.u32 %v711, 7
        %v713 = vsub.s32 0, %v712
        %v714 = vrot.slane %v709, %v713
        %v716 = vadd.f32 %v677, %v714
        %v717 = vadd.f32 %v678, %v714
        %v718 = vadd.f32 %v679, %v714
        %v719 = vadd.f32 %v680, %v714
        %v720 = vadd.f32 %v681, %v714
        %v721 = vadd.f32 %v682, %v714
        %v722 = vadd.f32 %v683, %v714
        %v723 = vadd.f32 %v684, %v714
        %v724 = vadd.f32 %v685, %v714
        %v725 = vadd.f32 %v686, %v714
        %v726 = vadd.f32 %v687, %v714
        %v727 = vadd.f32 %v688, %v714
        %v728 = vadd.f32 %v689, %v714
        %v729 = vadd.f32 %v690, %v714
        %v730 = vadd.f32 %v691, %v714
        %v731 = vadd.f32 %v692, %v714
        %v732 = vadd.f32 %v693, %v714
        %v733 = vadd.f32 %v694, %v714
        %v734 = vadd.f32 %v695, %v714
        %v735 = vadd.f32 %v696, %v714
        %v736 = vadd.f32 %v697, %v714
        %v737 = vadd.f32 %v698, %v714
        %v738 = vadd.f32 %v699, %v714
        %v739 = vadd.f32 %v700, %v714
        %v740 = vadd.f32 %v701, %v714
        %v741 = vadd.f32 %v702, %v714
        %v742 = vadd.f32 %v703, %v714
        %v743 = vadd.f32 %v704, %v714
        %v744 = vadd.f32 %v705, %v714
        %v745 = vadd.f32 %v706, %v714
        %v746 = vadd.f32 %v707, %v714
        %v747 = vadd.f32 %v708, %v714
        %v748 = vpack.c.bf16 %v717, %v716
        %v749 = vpack.c.bf16 %v719, %v718
        %v750 = vpack.c.bf16 %v721, %v720
        %v751 = vpack.c.bf16 %v723, %v722
        %v752 = vpack.c.bf16 %v725, %v724
        %v753 = vpack.c.bf16 %v727, %v726
        %v754 = vpack.c.bf16 %v729, %v728
        %v755 = vpack.c.bf16 %v731, %v730
        %v756 = vpack.c.bf16 %v733, %v732
        %v757 = vpack.c.bf16 %v735, %v734
        %v758 = vpack.c.bf16 %v737, %v736
        %v759 = vpack.c.bf16 %v739, %v738
        %v760 = vpack.c.bf16 %v741, %v740
        %v761 = vpack.c.bf16 %v743, %v742
        %v762 = vpack.c.bf16 %v745, %v744
        %v763 = vpack.c.bf16 %v747, %v746
        %v764 = vld [vmem:[#allocation7] sm:$0xff]
        %v765 = vld [vmem:[#allocation7 + $0x8] sm:$0xf]
        %v766 = vld [vmem:[#allocation7 + $0xc] sm:$0xff]
        %v767 = vld [vmem:[#allocation7 + $0x14] sm:$0xf]
        %v768 = vld [vmem:[#allocation7 + $0x18] sm:$0xff]
        %v769 = vld [vmem:[#allocation7 + $0x20] sm:$0xf]
        %v770 = vld [vmem:[#allocation7 + $0x24] sm:$0xff]
        %v771 = vld [vmem:[#allocation7 + $0x2c] sm:$0xf]
        %v772 = vld [vmem:[#allocation7 + $0x30] sm:$0xff]
        %v773 = vld [vmem:[#allocation7 + $0x38] sm:$0xf]
        %v774 = vld [vmem:[#allocation7 + $0x3c] sm:$0xff]
        %v775 = vld [vmem:[#allocation7 + $0x44] sm:$0xf]
        %v776 = vld [vmem:[#allocation7 + $0x48] sm:$0xff]
        %v777 = vld [vmem:[#allocation7 + $0x50] sm:$0xf]
        %v778 = vld [vmem:[#allocation7 + $0x54] sm:$0xff]
        %v779 = vld [vmem:[#allocation7 + $0x5c] sm:$0xf]
        %v780 = vld [vmem:[#allocation7 + $0x60] sm:$0xff]
        %v781 = vld [vmem:[#allocation7 + $0x68] sm:$0xf]
        %v782 = vld [vmem:[#allocation7 + $0x6c] sm:$0xff]
        %v783 = vld [vmem:[#allocation7 + $0x74] sm:$0xf]
        %v784 = vld [vmem:[#allocation7 + $0x78] sm:$0xff]
        %v785 = vld [vmem:[#allocation7 + $0x80] sm:$0xf]
        %v786 = vld [vmem:[#allocation7 + $0x84] sm:$0xff]
        %v787 = vld [vmem:[#allocation7 + $0x8c] sm:$0xf]
        %v788 = vld [vmem:[#allocation7 + $0x90] sm:$0xff]
        %v789 = vld [vmem:[#allocation7 + $0x98] sm:$0xf]
        %v790 = vld [vmem:[#allocation7 + $0x9c] sm:$0xff]
        %v791 = vld [vmem:[#allocation7 + $0xa4] sm:$0xf]
        %v792 = vld [vmem:[#allocation7 + $0xa8] sm:$0xff]
        %v793 = vld [vmem:[#allocation7 + $0xb0] sm:$0xf]
        %v794 = vld [vmem:[#allocation7 + $0xb4] sm:$0xff]
        %v795 = vld [vmem:[#allocation7 + $0xbc] sm:$0xf]
        %v796 = vld [vmem:[%s5] sm:$0x7]
        %v798 = vlaneseq
        %v799 = vshrl.u32 %v798, 7
        %v800 = vsub.s32 0, %v799
        %v801 = vrot.slane %v796, %v800
        %v802 = vlaneseq
        %v803 = vshrl.u32 %v802, 7
        %v804 = vsub.s32 1, %v803
        %v805 = vrot.slane %v796, %v804
        %v806 = vlaneseq
        %v807 = vshrl.u32 %v806, 7
        %v808 = vsub.s32 2, %v807
        %v809 = vrot.slane %v796, %v808
        %v845 = vunpack.c.l.b16 %v764
        %v846 = vunpack.c.h.b16 %v764
        %v847 = vunpack.c.l.b16 %v765
        %v848 = vunpack.c.l.b16 %v766
        %v849 = vunpack.c.h.b16 %v766
        %v850 = vunpack.c.l.b16 %v767
        %v851 = vunpack.c.l.b16 %v768
        %v852 = vunpack.c.h.b16 %v768
        %v853 = vunpack.c.l.b16 %v769
        %v854 = vunpack.c.l.b16 %v770
        %v855 = vunpack.c.h.b16 %v770
        %v856 = vunpack.c.l.b16 %v771
        %v857 = vunpack.c.l.b16 %v772
        %v858 = vunpack.c.h.b16 %v772
        %v859 = vunpack.c.l.b16 %v773
        %v860 = vunpack.c.l.b16 %v774
        %v861 = vunpack.c.h.b16 %v774
        %v862 = vunpack.c.l.b16 %v775
        %v863 = vunpack.c.l.b16 %v776
        %v864 = vunpack.c.h.b16 %v776
        %v865 = vunpack.c.l.b16 %v777
        %v866 = vunpack.c.l.b16 %v778
        %v867 = vunpack.c.h.b16 %v778
        %v868 = vunpack.c.l.b16 %v779
        %v869 = vunpack.c.l.b16 %v780
        %v870 = vunpack.c.h.b16 %v780
        %v871 = vunpack.c.l.b16 %v781
        %v872 = vunpack.c.l.b16 %v782
        %v873 = vunpack.c.h.b16 %v782
        %v874 = vunpack.c.l.b16 %v783
        %v875 = vunpack.c.l.b16 %v784
        %v876 = vunpack.c.h.b16 %v784
        %v877 = vunpack.c.l.b16 %v785
        %v878 = vunpack.c.l.b16 %v786
        %v879 = vunpack.c.h.b16 %v786
        %v880 = vunpack.c.l.b16 %v787
        %v881 = vunpack.c.l.b16 %v788
        %v882 = vunpack.c.h.b16 %v788
        %v883 = vunpack.c.l.b16 %v789
        %v884 = vunpack.c.l.b16 %v790
        %v885 = vunpack.c.h.b16 %v790
        %v886 = vunpack.c.l.b16 %v791
        %v887 = vunpack.c.l.b16 %v792
        %v888 = vunpack.c.h.b16 %v792
        %v889 = vunpack.c.l.b16 %v793
        %v890 = vunpack.c.l.b16 %v794
        %v891 = vunpack.c.h.b16 %v794
        %v892 = vunpack.c.l.b16 %v795
        %v893 = vpack.c.b16 %v848, %v845
        %v894 = vpack.c.b16 %v849, %v846
        %v895 = vpack.c.b16 %v850, %v847
        %v896 = vpack.c.b16 %v854, %v851
        %v897 = vpack.c.b16 %v855, %v852
        %v898 = vpack.c.b16 %v856, %v853
        %v899 = vpack.c.b16 %v860, %v857
        %v900 = vpack.c.b16 %v861, %v858
        %v901 = vpack.c.b16 %v862, %v859
        %v902 = vpack.c.b16 %v866, %v863
        %v903 = vpack.c.b16 %v867, %v864
        %v904 = vpack.c.b16 %v868, %v865
        %v905 = vpack.c.b16 %v872, %v869
        %v906 = vpack.c.b16 %v873, %v870
        %v907 = vpack.c.b16 %v874, %v871
        %v908 = vpack.c.b16 %v878, %v875
        %v909 = vpack.c.b16 %v879, %v876
        %v910 = vpack.c.b16 %v880, %v877
        %v911 = vpack.c.b16 %v884, %v881
        %v912 = vpack.c.b16 %v885, %v882
        %v913 = vpack.c.b16 %v886, %v883
        %v914 = vpack.c.b16 %v890, %v887
        %v915 = vpack.c.b16 %v891, %v888
        %v916 = vpack.c.b16 %v892, %v889
        %941 = vmatprep.subr.bf16.mxu0 %v915
        %942 = vmatpush1.bf16.msra.mxu0 %v914
        %943 = vmatprep.subr.bf16.mxu0 %v912
        %944 = vmatpush1.bf16.msra.mxu0 %v911
        %945 = vmatprep.subr.bf16.mxu0 %v909
        %946 = vmatpush1.bf16.msra.mxu0 %v908
        %947 = vmatprep.subr.bf16.mxu0 %v906
        %948 = vmatpush1.bf16.msra.mxu0 %v905
        %949 = vmatprep.subr.bf16.mxu0 %v903
        %950 = vmatpush1.bf16.msra.mxu0 %v902
        %951 = vmatprep.subr.bf16.mxu0 %v900
        %952 = vmatpush1.bf16.msra.mxu0 %v899
        %953 = vmatprep.subr.bf16.mxu0 %v897
        %954 = vmatpush1.bf16.msra.mxu0 %v896
        %955 = vmatprep.subr.bf16.mxu0 %v894
        %956 = vmatpush1.bf16.msra.mxu0 %v893
        %957 = vmatprep.subr.bf16.mxu0 0
        %958 = vmatpush2.bf16.msra.mxu0 0
        %959 = vmatprep.subr.bf16.mxu0 0
        %960 = vmatpush2.bf16.msra.mxu0 0
        %961 = vmatprep.subr.bf16.mxu0 0
        %962 = vmatpush2.bf16.msra.mxu0 0
        %963 = vmatprep.subr.bf16.mxu0 0
        %964 = vmatpush2.bf16.msra.mxu0 0
        %965 = vmatprep.subr.bf16.mxu0 0
        %966 = vmatpush2.bf16.msra.mxu0 0
        %967 = vmatprep.subr.bf16.mxu0 0
        %968 = vmatpush2.bf16.msra.mxu0 0
        %969 = vmatprep.subr.bf16.mxu0 0
        %970 = vmatpush2.bf16.msra.mxu0 0
        %971 = vmatprep.subr.bf16.mxu0 0
        %972 = vmatpush2.bf16.msra.mxu0 0
        %973 = vmatprep.mubr.bf16.mxu0 0
        %974 = vmatmul.mubr.bf16.gmra.mxu0 %v748
        %v975 = vpop.f32.mrf.mxu0
        %v976 = vadd.f32 %v801, %v975
        %v977 = vpop.f32.mrf.mxu0
        %v978 = vadd.f32 %v805, %v977
        %v979 = vpop.f32.mrf.mxu0
        %v980 = vadd.f32 %v801, %v979
        %v981 = vpop.f32.mrf.mxu0
        %v982 = vadd.f32 %v805, %v981
        %983 = vmatprep.mubr.bf16.mxu0 0
        %984 = vmatmul.mubr.bf16.gmra.mxu0 %v749
        %v985 = vpop.f32.mrf.mxu0
        %v986 = vadd.f32 %v801, %v985
        %v987 = vpop.f32.mrf.mxu0
        %v988 = vadd.f32 %v805, %v987
        %v989 = vpop.f32.mrf.mxu0
        %v990 = vadd.f32 %v801, %v989
        %v991 = vpop.f32.mrf.mxu0
        %v992 = vadd.f32 %v805, %v991
        %993 = vmatprep.mubr.bf16.mxu0 0
        %994 = vmatmul.mubr.bf16.gmra.mxu0 %v750
        %v995 = vpop.f32.mrf.mxu0
        %v996 = vadd.f32 %v801, %v995
        %v997 = vpop.f32.mrf.mxu0
        %v998 = vadd.f32 %v805, %v997
        %v999 = vpop.f32.mrf.mxu0
        %v1000 = vadd.f32 %v801, %v999
        %v1001 = vpop.f32.mrf.mxu0
        %v1002 = vadd.f32 %v805, %v1001
        %1003 = vmatprep.mubr.bf16.mxu0 0
        %1004 = vmatmul.mubr.bf16.gmra.mxu0 %v751
        %v1005 = vpop.f32.mrf.mxu0
        %v1006 = vadd.f32 %v801, %v1005
        %v1007 = vpop.f32.mrf.mxu0
        %v1008 = vadd.f32 %v805, %v1007
        %v1009 = vpop.f32.mrf.mxu0
        %v1010 = vadd.f32 %v801, %v1009
        %v1011 = vpop.f32.mrf.mxu0
        %v1012 = vadd.f32 %v805, %v1011
        %1013 = vmatprep.mubr.bf16.mxu0 0
        %1014 = vmatmul.mubr.bf16.gmra.mxu0 %v752
        %v1015 = vpop.f32.mrf.mxu0
        %v1016 = vadd.f32 %v801, %v1015
        %v1017 = vpop.f32.mrf.mxu0
        %v1018 = vadd.f32 %v805, %v1017
        %v1019 = vpop.f32.mrf.mxu0
        %v1020 = vadd.f32 %v801, %v1019
        %v1021 = vpop.f32.mrf.mxu0
        %v1022 = vadd.f32 %v805, %v1021
        %1023 = vmatprep.mubr.bf16.mxu0 0
        %1024 = vmatmul.mubr.bf16.gmra.mxu0 %v753
        %v1025 = vpop.f32.mrf.mxu0
        %v1026 = vadd.f32 %v801, %v1025
        %v1027 = vpop.f32.mrf.mxu0
        %v1028 = vadd.f32 %v805, %v1027
        %v1029 = vpop.f32.mrf.mxu0
        %v1030 = vadd.f32 %v801, %v1029
        %v1031 = vpop.f32.mrf.mxu0
        %v1032 = vadd.f32 %v805, %v1031
        %1033 = vmatprep.mubr.bf16.mxu0 0
        %1034 = vmatmul.mubr.bf16.gmra.mxu0 %v754
        %v1035 = vpop.f32.mrf.mxu0
        %v1036 = vadd.f32 %v801, %v1035
        %v1037 = vpop.f32.mrf.mxu0
        %v1038 = vadd.f32 %v805, %v1037
        %v1039 = vpop.f32.mrf.mxu0
        %v1040 = vadd.f32 %v801, %v1039
        %v1041 = vpop.f32.mrf.mxu0
        %v1042 = vadd.f32 %v805, %v1041
        %1043 = vmatprep.mubr.bf16.mxu0 0
        %1044 = vmatmul.mubr.bf16.gmra.mxu0 %v755
        %v1045 = vpop.f32.mrf.mxu0
        %v1046 = vadd.f32 %v801, %v1045
        %v1047 = vpop.f32.mrf.mxu0
        %v1048 = vadd.f32 %v805, %v1047
        %v1049 = vpop.f32.mrf.mxu0
        %v1050 = vadd.f32 %v801, %v1049
        %v1051 = vpop.f32.mrf.mxu0
        %v1052 = vadd.f32 %v805, %v1051
        %1053 = vmatprep.mubr.bf16.mxu0 0
        %1054 = vmatmul.mubr.bf16.gmra.mxu0 %v756
        %v1055 = vpop.f32.mrf.mxu0
        %v1056 = vadd.f32 %v801, %v1055
        %v1057 = vpop.f32.mrf.mxu0
        %v1058 = vadd.f32 %v805, %v1057
        %v1059 = vpop.f32.mrf.mxu0
        %v1060 = vadd.f32 %v801, %v1059
        %v1061 = vpop.f32.mrf.mxu0
        %v1062 = vadd.f32 %v805, %v1061
        %1063 = vmatprep.mubr.bf16.mxu0 0
        %1064 = vmatmul.mubr.bf16.gmra.mxu0 %v757
        %v1065 = vpop.f32.mrf.mxu0
        %v1066 = vadd.f32 %v801, %v1065
        %v1067 = vpop.f32.mrf.mxu0
        %v1068 = vadd.f32 %v805, %v1067
        %v1069 = vpop.f32.mrf.mxu0
        %v1070 = vadd.f32 %v801, %v1069
        %v1071 = vpop.f32.mrf.mxu0
        %v1072 = vadd.f32 %v805, %v1071
        %1073 = vmatprep.mubr.bf16.mxu0 0
        %1074 = vmatmul.mubr.bf16.gmra.mxu0 %v758
        %v1075 = vpop.f32.mrf.mxu0
        %v1076 = vadd.f32 %v801, %v1075
        %v1077 = vpop.f32.mrf.mxu0
        %v1078 = vadd.f32 %v805, %v1077
        %v1079 = vpop.f32.mrf.mxu0
        %v1080 = vadd.f32 %v801, %v1079
        %v1081 = vpop.f32.mrf.mxu0
        %v1082 = vadd.f32 %v805, %v1081
        %1083 = vmatprep.mubr.bf16.mxu0 0
        %1084 = vmatmul.mubr.bf16.gmra.mxu0 %v759
        %v1085 = vpop.f32.mrf.mxu0
        %v1086 = vadd.f32 %v801, %v1085
        %v1087 = vpop.f32.mrf.mxu0
        %v1088 = vadd.f32 %v805, %v1087
        %v1089 = vpop.f32.mrf.mxu0
        %v1090 = vadd.f32 %v801, %v1089
        %v1091 = vpop.f32.mrf.mxu0
        %v1092 = vadd.f32 %v805, %v1091
        %1093 = vmatprep.mubr.bf16.mxu0 0
        %1094 = vmatmul.mubr.bf16.gmra.mxu0 %v760
        %v1095 = vpop.f32.mrf.mxu0
        %v1096 = vadd.f32 %v801, %v1095
        %v1097 = vpop.f32.mrf.mxu0
        %v1098 = vadd.f32 %v805, %v1097
        %v1099 = vpop.f32.mrf.mxu0
        %v1100 = vadd.f32 %v801, %v1099
        %v1101 = vpop.f32.mrf.mxu0
        %v1102 = vadd.f32 %v805, %v1101
        %1103 = vmatprep.mubr.bf16.mxu0 0
        %1104 = vmatmul.mubr.bf16.gmra.mxu0 %v761
        %v1105 = vpop.f32.mrf.mxu0
        %v1106 = vadd.f32 %v801, %v1105
        %v1107 = vpop.f32.mrf.mxu0
        %v1108 = vadd.f32 %v805, %v1107
        %v1109 = vpop.f32.mrf.mxu0
        %v1110 = vadd.f32 %v801, %v1109
        %v1111 = vpop.f32.mrf.mxu0
        %v1112 = vadd.f32 %v805, %v1111
        %1113 = vmatprep.mubr.bf16.mxu0 0
        %1114 = vmatmul.mubr.bf16.gmra.mxu0 %v762
        %v1115 = vpop.f32.mrf.mxu0
        %v1116 = vadd.f32 %v801, %v1115
        %v1117 = vpop.f32.mrf.mxu0
        %v1118 = vadd.f32 %v805, %v1117
        %v1119 = vpop.f32.mrf.mxu0
        %v1120 = vadd.f32 %v801, %v1119
        %v1121 = vpop.f32.mrf.mxu0
        %v1122 = vadd.f32 %v805, %v1121
        %1123 = vmatprep.mubr.bf16.mxu0 0
        %1124 = vmatmul.mubr.bf16.gmra.mxu0 %v763
        %v1125 = vpop.f32.mrf.mxu0
        %v1126 = vadd.f32 %v801, %v1125
        %v1127 = vpop.f32.mrf.mxu0
        %v1128 = vadd.f32 %v805, %v1127
        %v1129 = vpop.f32.mrf.mxu0
        %v1130 = vadd.f32 %v801, %v1129
        %v1131 = vpop.f32.mrf.mxu0
        %v1132 = vadd.f32 %v805, %v1131
        %1133 = vdwg.mxu0
        %1134 = vmatprep.subr.bf16.mxu0 0
        %1135 = vmatpush1.bf16.msra.mxu0 %v916
        %1136 = vmatprep.subr.bf16.mxu0 0
        %1137 = vmatpush1.bf16.msra.mxu0 %v913
        %1138 = vmatprep.subr.bf16.mxu0 0
        %1139 = vmatpush1.bf16.msra.mxu0 %v910
        %1140 = vmatprep.subr.bf16.mxu0 0
        %1141 = vmatpush1.bf16.msra.mxu0 %v907
        %1142 = vmatprep.subr.bf16.mxu0 0
        %1143 = vmatpush1.bf16.msra.mxu0 %v904
        %1144 = vmatprep.subr.bf16.mxu0 0
        %1145 = vmatpush1.bf16.msra.mxu0 %v901
        %1146 = vmatprep.subr.bf16.mxu0 0
        %1147 = vmatpush1.bf16.msra.mxu0 %v898
        %1148 = vmatprep.subr.bf16.mxu0 0
        %1149 = vmatpush1.bf16.msra.mxu0 %v895
        %1150 = vmatprep.subr.bf16.mxu0 0
        %1151 = vmatpush2.bf16.msra.mxu0 0
        %1152 = vmatprep.subr.bf16.mxu0 0
        %1153 = vmatpush2.bf16.msra.mxu0 0
        %1154 = vmatprep.subr.bf16.mxu0 0
        %1155 = vmatpush2.bf16.msra.mxu0 0
        %1156 = vmatprep.subr.bf16.mxu0 0
        %1157 = vmatpush2.bf16.msra.mxu0 0
        %1158 = vmatprep.subr.bf16.mxu0 0
        %1159 = vmatpush2.bf16.msra.mxu0 0
        %1160 = vmatprep.subr.bf16.mxu0 0
        %1161 = vmatpush2.bf16.msra.mxu0 0
        %1162 = vmatprep.subr.bf16.mxu0 0
        %1163 = vmatpush2.bf16.msra.mxu0 0
        %1164 = vmatprep.subr.bf16.mxu0 0
        %1165 = vmatpush2.bf16.msra.mxu0 0
        %1166 = vmatprep.mubr.bf16.mxu0 0
        %1167 = vmatmul.mubr.bf16.gmra.mxu0 %v748
        %v1168 = vpop.f32.mrf.mxu0
        %v1169 = vadd.f32 %v809, %v1168
        %v1170 = vpop.f32.mrf.mxu0
        %v1171 = vpop.f32.mrf.mxu0
        %v1172 = vadd.f32 %v809, %v1171
        %v1173 = vpop.f32.mrf.mxu0
        %1174 = vmatprep.mubr.bf16.mxu0 0
        %1175 = vmatmul.mubr.bf16.gmra.mxu0 %v749
        %v1176 = vpop.f32.mrf.mxu0
        %v1177 = vadd.f32 %v809, %v1176
        %v1178 = vpop.f32.mrf.mxu0
        %v1179 = vpop.f32.mrf.mxu0
        %v1180 = vadd.f32 %v809, %v1179
        %v1181 = vpop.f32.mrf.mxu0
        %1182 = vmatprep.mubr.bf16.mxu0 0
        %1183 = vmatmul.mubr.bf16.gmra.mxu0 %v750
        %v1184 = vpop.f32.mrf.mxu0
        %v1185 = vadd.f32 %v809, %v1184
        %v1186 = vpop.f32.mrf.mxu0
        %v1187 = vpop.f32.mrf.mxu0
        %v1188 = vadd.f32 %v809, %v1187
        %v1189 = vpop.f32.mrf.mxu0
        %1190 = vmatprep.mubr.bf16.mxu0 0
        %1191 = vmatmul.mubr.bf16.gmra.mxu0 %v751
        %v1192 = vpop.f32.mrf.mxu0
        %v1193 = vadd.f32 %v809, %v1192
        %v1194 = vpop.f32.mrf.mxu0
        %v1195 = vpop.f32.mrf.mxu0
        %v1196 = vadd.f32 %v809, %v1195
        %v1197 = vpop.f32.mrf.mxu0
        %1198 = vmatprep.mubr.bf16.mxu0 0
        %1199 = vmatmul.mubr.bf16.gmra.mxu0 %v752
        %v1200 = vpop.f32.mrf.mxu0
        %v1201 = vadd.f32 %v809, %v1200
        %v1202 = vpop.f32.mrf.mxu0
        %v1203 = vpop.f32.mrf.mxu0
        %v1204 = vadd.f32 %v809, %v1203
        %v1205 = vpop.f32.mrf.mxu0
        %1206 = vmatprep.mubr.bf16.mxu0 0
        %1207 = vmatmul.mubr.bf16.gmra.mxu0 %v753
        %v1208 = vpop.f32.mrf.mxu0
        %v1209 = vadd.f32 %v809, %v1208
        %v1210 = vpop.f32.mrf.mxu0
        %v1211 = vpop.f32.mrf.mxu0
        %v1212 = vadd.f32 %v809, %v1211
        %v1213 = vpop.f32.mrf.mxu0
        %1214 = vmatprep.mubr.bf16.mxu0 0
        %1215 = vmatmul.mubr.bf16.gmra.mxu0 %v754
        %v1216 = vpop.f32.mrf.mxu0
        %v1217 = vadd.f32 %v809, %v1216
        %v1218 = vpop.f32.mrf.mxu0
        %v1219 = vpop.f32.mrf.mxu0
        %v1220 = vadd.f32 %v809, %v1219
        %v1221 = vpop.f32.mrf.mxu0
        %1222 = vmatprep.mubr.bf16.mxu0 0
        %1223 = vmatmul.mubr.bf16.gmra.mxu0 %v755
        %v1224 = vpop.f32.mrf.mxu0
        %v1225 = vadd.f32 %v809, %v1224
        %v1226 = vpop.f32.mrf.mxu0
        %v1227 = vpop.f32.mrf.mxu0
        %v1228 = vadd.f32 %v809, %v1227
        %v1229 = vpop.f32.mrf.mxu0
        %1230 = vmatprep.mubr.bf16.mxu0 0
        %1231 = vmatmul.mubr.bf16.gmra.mxu0 %v756
        %v1232 = vpop.f32.mrf.mxu0
        %v1233 = vadd.f32 %v809, %v1232
        %v1234 = vpop.f32.mrf.mxu0
        %v1235 = vpop.f32.mrf.mxu0
        %v1236 = vadd.f32 %v809, %v1235
        %v1237 = vpop.f32.mrf.mxu0
        %1238 = vmatprep.mubr.bf16.mxu0 0
        %1239 = vmatmul.mubr.bf16.gmra.mxu0 %v757
        %v1240 = vpop.f32.mrf.mxu0
        %v1241 = vadd.f32 %v809, %v1240
        %v1242 = vpop.f32.mrf.mxu0
        %v1243 = vpop.f32.mrf.mxu0
        %v1244 = vadd.f32 %v809, %v1243
        %v1245 = vpop.f32.mrf.mxu0
        %1246 = vmatprep.mubr.bf16.mxu0 0
        %1247 = vmatmul.mubr.bf16.gmra.mxu0 %v758
        %v1248 = vpop.f32.mrf.mxu0
        %v1249 = vadd.f32 %v809, %v1248
        %v1250 = vpop.f32.mrf.mxu0
        %v1251 = vpop.f32.mrf.mxu0
        %v1252 = vadd.f32 %v809, %v1251
        %v1253 = vpop.f32.mrf.mxu0
        %1254 = vmatprep.mubr.bf16.mxu0 0
        %1255 = vmatmul.mubr.bf16.gmra.mxu0 %v759
        %v1256 = vpop.f32.mrf.mxu0
        %v1257 = vadd.f32 %v809, %v1256
        %v1258 = vpop.f32.mrf.mxu0
        %v1259 = vpop.f32.mrf.mxu0
        %v1260 = vadd.f32 %v809, %v1259
        %v1261 = vpop.f32.mrf.mxu0
        %1262 = vmatprep.mubr.bf16.mxu0 0
        %1263 = vmatmul.mubr.bf16.gmra.mxu0 %v760
        %v1264 = vpop.f32.mrf.mxu0
        %v1265 = vadd.f32 %v809, %v1264
        %v1266 = vpop.f32.mrf.mxu0
        %v1267 = vpop.f32.mrf.mxu0
        %v1268 = vadd.f32 %v809, %v1267
        %v1269 = vpop.f32.mrf.mxu0
        %1270 = vmatprep.mubr.bf16.mxu0 0
        %1271 = vmatmul.mubr.bf16.gmra.mxu0 %v761
        %v1272 = vpop.f32.mrf.mxu0
        %v1273 = vadd.f32 %v809, %v1272
        %v1274 = vpop.f32.mrf.mxu0
        %v1275 = vpop.f32.mrf.mxu0
        %v1276 = vadd.f32 %v809, %v1275
        %v1277 = vpop.f32.mrf.mxu0
        %1278 = vmatprep.mubr.bf16.mxu0 0
        %1279 = vmatmul.mubr.bf16.gmra.mxu0 %v762
        %v1280 = vpop.f32.mrf.mxu0
        %v1281 = vadd.f32 %v809, %v1280
        %v1282 = vpop.f32.mrf.mxu0
        %v1283 = vpop.f32.mrf.mxu0
        %v1284 = vadd.f32 %v809, %v1283
        %v1285 = vpop.f32.mrf.mxu0
        %1286 = vmatprep.mubr.bf16.mxu0 0
        %1287 = vmatmul.mubr.bf16.gmra.mxu0 %v763
        %v1288 = vpop.f32.mrf.mxu0
        %v1289 = vadd.f32 %v809, %v1288
        %v1290 = vpop.f32.mrf.mxu0
        %v1291 = vpop.f32.mrf.mxu0
        %v1292 = vadd.f32 %v809, %v1291
        %v1293 = vpop.f32.mrf.mxu0
        %1294 = vdwg.mxu0
        %v1295 = vpack.c.bf16 %v980, %v976
        %v1296 = vpack.c.bf16 %v982, %v978
        %v1297 = vpack.c.bf16 %v1172, %v1169
        %v1298 = vpack.c.bf16 %v990, %v986
        %v1299 = vpack.c.bf16 %v992, %v988
        %v1300 = vpack.c.bf16 %v1180, %v1177
        %v1301 = vpack.c.bf16 %v1000, %v996
        %v1302 = vpack.c.bf16 %v1002, %v998
        %v1303 = vpack.c.bf16 %v1188, %v1185
        %v1304 = vpack.c.bf16 %v1010, %v1006
        %v1305 = vpack.c.bf16 %v1012, %v1008
        %v1306 = vpack.c.bf16 %v1196, %v1193
        %v1307 = vpack.c.bf16 %v1020, %v1016
        %v1308 = vpack.c.bf16 %v1022, %v1018
        %v1309 = vpack.c.bf16 %v1204, %v1201
        %v1310 = vpack.c.bf16 %v1030, %v1026
        %v1311 = vpack.c.bf16 %v1032, %v1028
        %v1312 = vpack.c.bf16 %v1212, %v1209
        %v1313 = vpack.c.bf16 %v1040, %v1036
        %v1314 = vpack.c.bf16 %v1042, %v1038
        %v1315 = vpack.c.bf16 %v1220, %v1217
        %v1316 = vpack.c.bf16 %v1050, %v1046
        %v1317 = vpack.c.bf16 %v1052, %v1048
        %v1318 = vpack.c.bf16 %v1228, %v1225
        %v1319 = vpack.c.bf16 %v1060, %v1056
        %v1320 = vpack.c.bf16 %v1062, %v1058
        %v1321 = vpack.c.bf16 %v1236, %v1233
        %v1322 = vpack.c.bf16 %v1070, %v1066
        %v1323 = vpack.c.bf16 %v1072, %v1068
        %v1324 = vpack.c.bf16 %v1244, %v1241
        %v1325 = vpack.c.bf16 %v1080, %v1076
        %v1326 = vpack.c.bf16 %v1082, %v1078
        %v1327 = vpack.c.bf16 %v1252, %v1249
        %v1328 = vpack.c.bf16 %v1090, %v1086
        %v1329 = vpack.c.bf16 %v1092, %v1088
        %v1330 = vpack.c.bf16 %v1260, %v1257
        %v1331 = vpack.c.bf16 %v1100, %v1096
        %v1332 = vpack.c.bf16 %v1102, %v1098
        %v1333 = vpack.c.bf16 %v1268, %v1265
        %v1334 = vpack.c.bf16 %v1110, %v1106
        %v1335 = vpack.c.bf16 %v1112, %v1108
        %v1336 = vpack.c.bf16 %v1276, %v1273
        %v1337 = vpack.c.bf16 %v1120, %v1116
        %v1338 = vpack.c.bf16 %v1122, %v1118
        %v1339 = vpack.c.bf16 %v1284, %v1281
        %v1340 = vpack.c.bf16 %v1130, %v1126
        %v1341 = vpack.c.bf16 %v1132, %v1128
        %v1342 = vpack.c.bf16 %v1292, %v1289
        %v1391 = vunpack.c.l.b16 %v1295
        %v1392 = vunpack.c.l.b16 %v1296
        %v1393 = vunpack.c.l.b16 %v1297
        %v1394 = vunpack.c.h.b16 %v1295
        %v1395 = vunpack.c.h.b16 %v1296
        %v1396 = vunpack.c.h.b16 %v1297
        %v1397 = vunpack.c.l.b16 %v1298
        %v1398 = vunpack.c.l.b16 %v1299
        %v1399 = vunpack.c.l.b16 %v1300
        %v1400 = vunpack.c.h.b16 %v1298
        %v1401 = vunpack.c.h.b16 %v1299
        %v1402 = vunpack.c.h.b16 %v1300
        %v1403 = vunpack.c.l.b16 %v1301
        %v1404 = vunpack.c.l.b16 %v1302
        %v1405 = vunpack.c.l.b16 %v1303
        %v1406 = vunpack.c.h.b16 %v1301
        %v1407 = vunpack.c.h.b16 %v1302
        %v1408 = vunpack.c.h.b16 %v1303
        %v1409 = vunpack.c.l.b16 %v1304
        %v1410 = vunpack.c.l.b16 %v1305
        %v1411 = vunpack.c.l.b16 %v1306
        %v1412 = vunpack.c.h.b16 %v1304
        %v1413 = vunpack.c.h.b16 %v1305
        %v1414 = vunpack.c.h.b16 %v1306
        %v1415 = vunpack.c.l.b16 %v1307
        %v1416 = vunpack.c.l.b16 %v1308
        %v1417 = vunpack.c.l.b16 %v1309
        %v1418 = vunpack.c.h.b16 %v1307
        %v1419 = vunpack.c.h.b16 %v1308
        %v1420 = vunpack.c.h.b16 %v1309
        %v1421 = vunpack.c.l.b16 %v1310
        %v1422 = vunpack.c.l.b16 %v1311
        %v1423 = vunpack.c.l.b16 %v1312
        %v1424 = vunpack.c.h.b16 %v1310
        %v1425 = vunpack.c.h.b16 %v1311
        %v1426 = vunpack.c.h.b16 %v1312
        %v1427 = vunpack.c.l.b16 %v1313
        %v1428 = vunpack.c.l.b16 %v1314
        %v1429 = vunpack.c.l.b16 %v1315
        %v1430 = vunpack.c.h.b16 %v1313
        %v1431 = vunpack.c.h.b16 %v1314
        %v1432 = vunpack.c.h.b16 %v1315
        %v1433 = vunpack.c.l.b16 %v1316
        %v1434 = vunpack.c.l.b16 %v1317
        %v1435 = vunpack.c.l.b16 %v1318
        %v1436 = vunpack.c.h.b16 %v1316
        %v1437 = vunpack.c.h.b16 %v1317
        %v1438 = vunpack.c.h.b16 %v1318
        %v1439 = vunpack.c.l.b16 %v1319
        %v1440 = vunpack.c.l.b16 %v1320
        %v1441 = vunpack.c.l.b16 %v1321
        %v1442 = vunpack.c.h.b16 %v1319
        %v1443 = vunpack.c.h.b16 %v1320
        %v1444 = vunpack.c.h.b16 %v1321
        %v1445 = vunpack.c.l.b16 %v1322
        %v1446 = vunpack.c.l.b16 %v1323
        %v1447 = vunpack.c.l.b16 %v1324
        %v1448 = vunpack.c.h.b16 %v1322
        %v1449 = vunpack.c.h.b16 %v1323
        %v1450 = vunpack.c.h.b16 %v1324
        %v1451 = vunpack.c.l.b16 %v1325
        %v1452 = vunpack.c.l.b16 %v1326
        %v1453 = vunpack.c.l.b16 %v1327
        %v1454 = vunpack.c.h.b16 %v1325
        %v1455 = vunpack.c.h.b16 %v1326
        %v1456 = vunpack.c.h.b16 %v1327
        %v1457 = vunpack.c.l.b16 %v1328
        %v1458 = vunpack.c.l.b16 %v1329
        %v1459 = vunpack.c.l.b16 %v1330
        %v1460 = vunpack.c.h.b16 %v1328
        %v1461 = vunpack.c.h.b16 %v1329
        %v1462 = vunpack.c.h.b16 %v1330
        %v1463 = vunpack.c.l.b16 %v1331
        %v1464 = vunpack.c.l.b16 %v1332
        %v1465 = vunpack.c.l.b16 %v1333
        %v1466 = vunpack.c.h.b16 %v1331
        %v1467 = vunpack.c.h.b16 %v1332
        %v1468 = vunpack.c.h.b16 %v1333
        %v1469 = vunpack.c.l.b16 %v1334
        %v1470 = vunpack.c.l.b16 %v1335
        %v1471 = vunpack.c.l.b16 %v1336
        %v1472 = vunpack.c.h.b16 %v1334
        %v1473 = vunpack.c.h.b16 %v1335
        %v1474 = vunpack.c.h.b16 %v1336
        %v1475 = vunpack.c.l.b16 %v1337
        %v1476 = vunpack.c.l.b16 %v1338
        %v1477 = vunpack.c.l.b16 %v1339
        %v1478 = vunpack.c.h.b16 %v1337
        %v1479 = vunpack.c.h.b16 %v1338
        %v1480 = vunpack.c.h.b16 %v1339
        %v1481 = vunpack.c.l.b16 %v1340
        %v1482 = vunpack.c.l.b16 %v1341
        %v1483 = vunpack.c.l.b16 %v1342
        %v1484 = vunpack.c.h.b16 %v1340
        %v1485 = vunpack.c.h.b16 %v1341
        %v1486 = vunpack.c.h.b16 %v1342
        %v1487 = vpack.c.b16 %v1392, %v1391
        %v1488 = vpack.c.b16 %v1393, %v1393
        %v1489 = vpack.c.b16 %v1395, %v1394
        %v1490 = vpack.c.b16 %v1396, %v1396
        %v1491 = vpack.c.b16 %v1398, %v1397
        %v1492 = vpack.c.b16 %v1399, %v1399
        %v1493 = vpack.c.b16 %v1401, %v1400
        %v1494 = vpack.c.b16 %v1402, %v1402
        %v1495 = vpack.c.b16 %v1404, %v1403
        %v1496 = vpack.c.b16 %v1405, %v1405
        %v1497 = vpack.c.b16 %v1407, %v1406
        %v1498 = vpack.c.b16 %v1408, %v1408
        %v1499 = vpack.c.b16 %v1410, %v1409
        %v1500 = vpack.c.b16 %v1411, %v1411
        %v1501 = vpack.c.b16 %v1413, %v1412
        %v1502 = vpack.c.b16 %v1414, %v1414
        %v1503 = vpack.c.b16 %v1416, %v1415
        %v1504 = vpack.c.b16 %v1417, %v1417
        %v1505 = vpack.c.b16 %v1419, %v1418
        %v1506 = vpack.c.b16 %v1420, %v1420
        %v1507 = vpack.c.b16 %v1422, %v1421
        %v1508 = vpack.c.b16 %v1423, %v1423
        %v1509 = vpack.c.b16 %v1425, %v1424
        %v1510 = vpack.c.b16 %v1426, %v1426
        %v1511 = vpack.c.b16 %v1428, %v1427
        %v1512 = vpack.c.b16 %v1429, %v1429
        %v1513 = vpack.c.b16 %v1431, %v1430
        %v1514 = vpack.c.b16 %v1432, %v1432
        %v1515 = vpack.c.b16 %v1434, %v1433
        %v1516 = vpack.c.b16 %v1435, %v1435
        %v1517 = vpack.c.b16 %v1437, %v1436
        %v1518 = vpack.c.b16 %v1438, %v1438
        %v1519 = vpack.c.b16 %v1440, %v1439
        %v1520 = vpack.c.b16 %v1441, %v1441
        %v1521 = vpack.c.b16 %v1443, %v1442
        %v1522 = vpack.c.b16 %v1444, %v1444
        %v1523 = vpack.c.b16 %v1446, %v1445
        %v1524 = vpack.c.b16 %v1447, %v1447
        %v1525 = vpack.c.b16 %v1449, %v1448
        %v1526 = vpack.c.b16 %v1450, %v1450
        %v1527 = vpack.c.b16 %v1452, %v1451
        %v1528 = vpack.c.b16 %v1453, %v1453
        %v1529 = vpack.c.b16 %v1455, %v1454
        %v1530 = vpack.c.b16 %v1456, %v1456
        %v1531 = vpack.c.b16 %v1458, %v1457
        %v1532 = vpack.c.b16 %v1459, %v1459
        %v1533 = vpack.c.b16 %v1461, %v1460
        %v1534 = vpack.c.b16 %v1462, %v1462
        %v1535 = vpack.c.b16 %v1464, %v1463
        %v1536 = vpack.c.b16 %v1465, %v1465
        %v1537 = vpack.c.b16 %v1467, %v1466
        %v1538 = vpack.c.b16 %v1468, %v1468
        %v1539 = vpack.c.b16 %v1470, %v1469
        %v1540 = vpack.c.b16 %v1471, %v1471
        %v1541 = vpack.c.b16 %v1473, %v1472
        %v1542 = vpack.c.b16 %v1474, %v1474
        %v1543 = vpack.c.b16 %v1476, %v1475
        %v1544 = vpack.c.b16 %v1477, %v1477
        %v1545 = vpack.c.b16 %v1479, %v1478
        %v1546 = vpack.c.b16 %v1480, %v1480
        %v1547 = vpack.c.b16 %v1482, %v1481
        %v1548 = vpack.c.b16 %v1483, %v1483
        %v1549 = vpack.c.b16 %v1485, %v1484
        %v1550 = vpack.c.b16 %v1486, %v1486
        %1615 = vst [vmem:[%s298] sm:$0xff] %v1487
        %1616 = vst [vmem:[%s298 + $0x8] sm:$0xf] %v1488
        %1617 = vst [vmem:[%s298 + $0xc] sm:$0xff] %v1489
        %1618 = vst [vmem:[%s298 + $0x14] sm:$0xf] %v1490
        %1619 = vst [vmem:[%s298 + $0x18] sm:$0xff] %v1491
        %1620 = vst [vmem:[%s298 + $0x20] sm:$0xf] %v1492
        %1621 = vst [vmem:[%s298 + $0x24] sm:$0xff] %v1493
        %1622 = vst [vmem:[%s298 + $0x2c] sm:$0xf] %v1494
        %1623 = vst [vmem:[%s298 + $0x30] sm:$0xff] %v1495
        %1624 = vst [vmem:[%s298 + $0x38] sm:$0xf] %v1496
        %1625 = vst [vmem:[%s298 + $0x3c] sm:$0xff] %v1497
        %1626 = vst [vmem:[%s298 + $0x44] sm:$0xf] %v1498
        %1627 = vst [vmem:[%s298 + $0x48] sm:$0xff] %v1499
        %1628 = vst [vmem:[%s298 + $0x50] sm:$0xf] %v1500
        %1629 = vst [vmem:[%s298 + $0x54] sm:$0xff] %v1501
        %1630 = vst [vmem:[%s298 + $0x5c] sm:$0xf] %v1502
        %1631 = vst [vmem:[%s298 + $0x60] sm:$0xff] %v1503
        %1632 = vst [vmem:[%s298 + $0x68] sm:$0xf] %v1504
        %1633 = vst [vmem:[%s298 + $0x6c] sm:$0xff] %v1505
        %1634 = vst [vmem:[%s298 + $0x74] sm:$0xf] %v1506
        %1635 = vst [vmem:[%s298 + $0x78] sm:$0xff] %v1507
        %1636 = vst [vmem:[%s298 + $0x80] sm:$0xf] %v1508
        %1637 = vst [vmem:[%s298 + $0x84] sm:$0xff] %v1509
        %1638 = vst [vmem:[%s298 + $0x8c] sm:$0xf] %v1510
        %1639 = vst [vmem:[%s298 + $0x90] sm:$0xff] %v1511
        %1640 = vst [vmem:[%s298 + $0x98] sm:$0xf] %v1512
        %1641 = vst [vmem:[%s298 + $0x9c] sm:$0xff] %v1513
        %1642 = vst [vmem:[%s298 + $0xa4] sm:$0xf] %v1514
        %1643 = vst [vmem:[%s298 + $0xa8] sm:$0xff] %v1515
        %1644 = vst [vmem:[%s298 + $0xb0] sm:$0xf] %v1516
        %1645 = vst [vmem:[%s298 + $0xb4] sm:$0xff] %v1517
        %1646 = vst [vmem:[%s298 + $0xbc] sm:$0xf] %v1518
        %1647 = vst [vmem:[%s298 + $0xc0] sm:$0xff] %v1519
        %1648 = vst [vmem:[%s298 + $0xc8] sm:$0xf] %v1520
        %1649 = vst [vmem:[%s298 + $0xcc] sm:$0xff] %v1521
        %1650 = vst [vmem:[%s298 + $0xd4] sm:$0xf] %v1522
        %1651 = vst [vmem:[%s298 + $0xd8] sm:$0xff] %v1523
        %1652 = vst [vmem:[%s298 + $0xe0] sm:$0xf] %v1524
        %1653 = vst [vmem:[%s298 + $0xe4] sm:$0xff] %v1525
        %1654 = vst [vmem:[%s298 + $0xec] sm:$0xf] %v1526
        %1655 = vst [vmem:[%s298 + $0xf0] sm:$0xff] %v1527
        %1656 = vst [vmem:[%s298 + $0xf8] sm:$0xf] %v1528
        %1657 = vst [vmem:[%s298 + $0xfc] sm:$0xff] %v1529
        %1658 = vst [vmem:[%s298 + $0x104] sm:$0xf] %v1530
        %1659 = vst [vmem:[%s298 + $0x108] sm:$0xff] %v1531
        %1660 = vst [vmem:[%s298 + $0x110] sm:$0xf] %v1532
        %1661 = vst [vmem:[%s298 + $0x114] sm:$0xff] %v1533
        %1662 = vst [vmem:[%s298 + $0x11c] sm:$0xf] %v1534
        %1663 = vst [vmem:[%s298 + $0x120] sm:$0xff] %v1535
        %1664 = vst [vmem:[%s298 + $0x128] sm:$0xf] %v1536
        %1665 = vst [vmem:[%s298 + $0x12c] sm:$0xff] %v1537
        %1666 = vst [vmem:[%s298 + $0x134] sm:$0xf] %v1538
        %1667 = vst [vmem:[%s298 + $0x138] sm:$0xff] %v1539
        %1668 = vst [vmem:[%s298 + $0x140] sm:$0xf] %v1540
        %1669 = vst [vmem:[%s298 + $0x144] sm:$0xff] %v1541
        %1670 = vst [vmem:[%s298 + $0x14c] sm:$0xf] %v1542
        %1671 = vst [vmem:[%s298 + $0x150] sm:$0xff] %v1543
        %1672 = vst [vmem:[%s298 + $0x158] sm:$0xf] %v1544
        %1673 = vst [vmem:[%s298 + $0x15c] sm:$0xff] %v1545
        %1674 = vst [vmem:[%s298 + $0x164] sm:$0xf] %v1546
        %1675 = vst [vmem:[%s298 + $0x168] sm:$0xff] %v1547
        %1676 = vst [vmem:[%s298 + $0x170] sm:$0xf] %v1548
        %1677 = vst [vmem:[%s298 + $0x174] sm:$0xff] %v1549
        %1678 = vst [vmem:[%s298 + $0x17c] sm:$0xf] %v1550
        %s1679 = sand.u32 %s163, 1
        %s1680 = scalar_lea.sflag [#allocation4], %s1679
        %s1681 = sand.u32 %s163, 1
        %s1682 = smul.addr %s1681, 384
        %s1683 = scalar_lea.vmem [#allocation8], %s1682
        // Predicated region
        $region57: #{tpu_custom_call.1} parent=43 // pred_check
          %p1684 = pneg %p173
        $region58: #{tpu_custom_call.1} parent=43 // pred_check_branch
          %1686 = sbr.rel (%p1684) target = $region60
        $region59: #{tpu_custom_call.1} parent=43 // pred_region
          %s1688 = ssub.s32 6144, 6144
          %1689 = vsyncadd %s1680, %s1688
          %s1690 = smul.addr %s24, 96
          %s1691 = smul.addr %s1690, 64
          %s1692 = scalar_lea.hbm %s6, %s1691
          %s1693 = sshll.u32 %s1683, 4
          %s1694 = int_to_ptr.vmem [resolvable:$true] %s1693
          %1699 = dma.vmem_to_hbm [thread:$0]  %s1694, 6144, %s1692, %s1680, 192, 192, 12
        $region60: #{tpu_custom_call.1} parent=43 // pred_fallthru
          _
      $region44: #{tpu_custom_call.1} parent=5 // pred_fallthru
        _
      %p1700 = scmp.le.s32.totalorder 2, %s19
      // Predicated region
      $region61: #{tpu_custom_call.1} parent=5 // pred_check
        %p1701 = pneg %p1700
      $region62: #{tpu_custom_call.1} parent=5 // pred_check_branch
        %1703 = sbr.rel (%p1701) target = $region64
      $region63: #{tpu_custom_call.1} parent=5 // pred_region
        %s1704 = ssub.s32 %s19, 2
        // Predicated region
        $region65: #{tpu_custom_call.1} parent=63 // pred_check
          %p1705 = pneg %p179
        $region66: #{tpu_custom_call.1} parent=63 // pred_check_branch
          %1707 = sbr.rel (%p1705) target = $region68
        $region67: #{tpu_custom_call.1} parent=63 // pred_region
          %s1708 = sand.u32 %s164, 1
          %s1709 = scalar_lea.sflag [#allocation4], %s1708
          %s1710 = sand.u32 %s164, 1
          %s1711 = smul.addr %s1710, 384
          %s1712 = scalar_lea.vmem [#allocation8], %s1711
          %1713 = dma.done %s1709, 6144
        $region68: #{tpu_custom_call.1} parent=63 // pred_fallthru
          _
      $region64: #{tpu_custom_call.1} parent=5 // pred_fallthru
        _
    $region6: #{tpu_custom_call.1} parent=1 // loop_footer
      %s23 = sadd.s32 1, %s19
    $region7: #{tpu_custom_call.1} parent=1 // loop_footer_branch
      %18 = sbr.rel target = $region3
    $region8: #{tpu_custom_call.1} parent=1 // loop_exit
      _
    %1714 = vsyncpa [#allocation3], 1
    %s1715 = scalar_lea.sflag [#allocation3], 1
    %1716 = vsyncpa %s1715, 1
    %1717 = vsyncpa [#allocation6], 1
    %1718 = vsyncpa [#allocation4], 1
    %s1719 = scalar_lea.sflag [#allocation4], 1
    %1720 = vsyncpa %s1719, 1

</llo_original>
